<compile_context>
chip_gen: v6e
topology: v6e:2x2x1
jax: 0.10.0
libtpu: 0.0.40
codegen_flags: <defaults>
</compile_context>

<pallas_src>
import functools

import jax
import jax.numpy as jnp
from jax.experimental import pallas as pl
from jax.experimental.pallas import tpu as pltpu


# ----------------------------------------------------------------------------
# Fused kernel: conv1 -> ReLU -> conv2 -> ReLU -> conv3 (+ skip) -> ReLU
# ----------------------------------------------------------------------------
def _block_kernel(has_skip, x_ref, w1_ref, b1_ref, w2_ref, b2_ref,
                  w3_ref, b3_ref, *rest):
    """One batch element.

    x_ref  : (1, H, W*Cin)        input, channels-minor, lane-dense
    wK_ref : (3, W*Cin_k, W*Cout) banded per-ky-tap weight matrices
    bK_ref : (1, W*Cout)          bias tiled over W (lane-dense row)
    wskip  : (W*Cin, W*Cout)      block-diagonal 1x1 skip weights (if has_skip)
    o_ref  : (1, H, W*Cout)
    scratch: three (H+2, W*C) VMEM buffers for H-zero-padded activations
    """
    if has_skip:
        wskip_ref = rest[0]
        o_ref, xpad, h1pad, h2pad = rest[1:]
    else:
        wskip_ref = None
        o_ref, xpad, h1pad, h2pad = rest

    H = o_ref.shape[1]

    def stage(dst_pad, rows):
        # Zero-pad along H into VMEM scratch (rows 0 and H+1 are the halo).
        dst_pad[...] = jnp.zeros(dst_pad.shape, jnp.float32)
        dst_pad[1:H + 1, :] = rows

    def conv3x3(src_pad, w_ref, b_ref, relu):
        # Three shifted row-slabs, one banded matmul each (MXU), then bias.
        acc = jnp.dot(src_pad[0:H, :], w_ref[0],
                      preferred_element_type=jnp.float32)
        acc = acc + jnp.dot(src_pad[1:H + 1, :], w_ref[1],
                            preferred_element_type=jnp.float32)
        acc = acc + jnp.dot(src_pad[2:H + 2, :], w_ref[2],
                            preferred_element_type=jnp.float32)
        acc = acc + b_ref[...]
        return jnp.maximum(acc, 0.0) if relu else acc

    x = x_ref[0].astype(jnp.float32)            # (H, W*Cin)

    stage(xpad, x)
    h1 = conv3x3(xpad, w1_ref, b1_ref, relu=True)

    stage(h1pad, h1)
    h2 = conv3x3(h1pad, w2_ref, b2_ref, relu=True)

    stage(h2pad, h2)
    h3 = conv3x3(h2pad, w3_ref, b3_ref, relu=False)

    if has_skip:
        skip = jnp.dot(x, wskip_ref[...], preferred_element_type=jnp.float32)
    else:
        skip = x                                # nn.Identity(): direct add

    o_ref[0] = jnp.maximum(h3 + skip, 0.0).astype(o_ref.dtype)


# ----------------------------------------------------------------------------
# Wrapper: weight pre-baking + pallas_call
# ----------------------------------------------------------------------------
def _band_conv_weights(w_hwio, W):
    """HWIO (3,3,Cin,Cout) -> (3, W*Cin, W*Cout) banded matrices, one per ky.

    M[ky][x_in*Cin+ci, x_out*Cout+co] = w[ky, kx, ci, co] with
    x_in = x_out + kx - 1 ('same' zero padding along W folded into zeros).
    """
    _, _, Cin, Cout = w_hwio.shape
    mats = []
    for dy in range(3):
        m = jnp.zeros((W, Cin, W, Cout), w_hwio.dtype)
        for dx in range(3):
            shift = jnp.eye(W, k=1 - dx, dtype=w_hwio.dtype)   # (x_in, x_out)
            m = m + jnp.einsum("ab,cd->acbd", shift, w_hwio[dy, dx])
        mats.append(m.reshape(W * Cin, W * Cout))
    return jnp.stack(mats, axis=0)


def block_forward(params, x_nchw):
    """Forward pass of `Block`. Input/output are NCHW to match PyTorch."""
    x = jnp.transpose(x_nchw, (0, 2, 3, 1))     # NCHW -> NHWC
    N, H, W, Cin = x.shape
    Cout = params["b1"].shape[0]
    has_skip = "w_skip" in params

    w1 = _band_conv_weights(params["w1"], W)    # (3, W*Cin,  W*Cout)
    w2 = _band_conv_weights(params["w2"], W)    # (3, W*Cout, W*Cout)
    w3 = _band_conv_weights(params["w3"], W)
    b1 = jnp.tile(params["b1"], W).reshape(1, W * Cout)
    b2 = jnp.tile(params["b2"], W).reshape(1, W * Cout)
    b3 = jnp.tile(params["b3"], W).reshape(1, W * Cout)

    x_flat = x.reshape(N, H, W * Cin)           # lane-dense, free reshape

    in_specs = [
        pl.BlockSpec((1, H, W * Cin), lambda n: (n, 0, 0)),
        pl.BlockSpec((3, W * Cin, W * Cout), lambda n: (0, 0, 0)),
        pl.BlockSpec((1, W * Cout), lambda n: (0, 0)),
        pl.BlockSpec((3, W * Cout, W * Cout), lambda n: (0, 0, 0)),
        pl.BlockSpec((1, W * Cout), lambda n: (0, 0)),
        pl.BlockSpec((3, W * Cout, W * Cout), lambda n: (0, 0, 0)),
        pl.BlockSpec((1, W * Cout), lambda n: (0, 0)),
    ]
    args = [x_flat, w1, b1, w2, b2, w3, b3]
    if has_skip:
        # block-diag( w_skip ) : 1x1 conv over the flattened W*C layout
        skip_mat = jnp.einsum(
            "ab,cd->acbd", jnp.eye(W, dtype=params["w_skip"].dtype),
            params["w_skip"]).reshape(W * Cin, W * Cout)
        in_specs.append(pl.BlockSpec((W * Cin, W * Cout), lambda n: (0, 0)))
        args.append(skip_mat)

    out_flat = pl.pallas_call(
        functools.partial(_block_kernel, has_skip),
        out_shape=jax.ShapeDtypeStruct((N, H, W * Cout), x.dtype),
        grid=(N,),
        in_specs=in_specs,
        out_specs=pl.BlockSpec((1, H, W * Cout), lambda n: (n, 0, 0)),
        scratch_shapes=[
            pltpu.VMEM((H + 2, W * Cin), jnp.float32),
            pltpu.VMEM((H + 2, W * Cout), jnp.float32),
            pltpu.VMEM((H + 2, W * Cout), jnp.float32),
        ],
        compiler_params=pltpu.CompilerParams(
            dimension_semantics=("parallel",)),   # batch across v7x cores
    )(*args)

    out = out_flat.reshape(N, H, W, Cout)
    return jnp.transpose(out, (0, 3, 1, 2))     # NHWC -> NCHW


# ----------------------------------------------------------------------------
# Parameter init (shapes match the PyTorch module)
# ----------------------------------------------------------------------------
def init_block_params(key, n_in, n_out):
    ks = jax.random.split(key, 7)

    def w3(k, ci, co):  # HWIO
        return jax.random.normal(k, (3, 3, ci, co), jnp.float32) * 0.1

    params = {
        "w1": w3(ks[0], n_in, n_out),
        "b1": jax.random.normal(ks[1], (n_out,), jnp.float32) * 0.1,
        "w2": w3(ks[2], n_out, n_out),
        "b2": jax.random.normal(ks[3], (n_out,), jnp.float32) * 0.1,
        "w3": w3(ks[4], n_out, n_out),
        "b3": jax.random.normal(ks[5], (n_out,), jnp.float32) * 0.1,
    }
    if n_in != n_out:
        params["w_skip"] = (
            jax.random.normal(ks[6], (n_in, n_out), jnp.float32) * 0.1)
    # else: nn.Identity() -> no skip weights, kernel adds x directly.
    return params


# ----------------------------------------------------------------------------
# Pure-JAX reference for verification
# ----------------------------------------------------------------------------
def _conv_ref(x_nhwc, w, b):
    y = jax.lax.conv_general_dilated(
        x_nhwc, w, window_strides=(1, 1), padding="SAME",
        dimension_numbers=("NHWC", "HWIO", "NHWC"))
    return y + b


def block_forward_ref(params, x_nchw):
    x = jnp.transpose(x_nchw, (0, 2, 3, 1))
    h = jax.nn.relu(_conv_ref(x, params["w1"], params["b1"]))
    h = jax.nn.relu(_conv_ref(h, params["w2"], params["b2"]))
    y = _conv_ref(h, params["w3"], params["b3"])
    if "w_skip" in params:
        skip = jnp.einsum("nhwc,cd->nhwd", x, params["w_skip"])
    else:
        skip = x
    out = jax.nn.relu(y + skip)
    return jnp.transpose(out, (0, 3, 1, 2))


if __name__ == "__main__":
    key = jax.random.PRNGKey(0)
    k_x, k_p, k_x2, k_p2 = jax.random.split(key, 4)

    # Case 1: n_in != n_out  (1x1 conv skip path)
    N, C_IN, C_OUT, H, W = 2, 4, 8, 16, 16
    x = jax.random.normal(k_x, (N, C_IN, H, W), jnp.float32)   # NCHW input
    params = init_block_params(k_p, C_IN, C_OUT)

    out = jax.block_until_ready(block_forward(params, x))
    ref = block_forward_ref(params, x)
    assert out.shape == (N, C_OUT, H, W)
    assert jnp.allclose(out, ref, atol=2e-4, rtol=2e-4), "mismatch (skip conv)"

    # Case 2: n_in == n_out  (nn.Identity skip path, direct add in-kernel)
    x2 = jax.random.normal(k_x2, (N, C_OUT, H, W), jnp.float32)
    params2 = init_block_params(k_p2, C_OUT, C_OUT)

    out2 = jax.block_until_ready(block_forward(params2, x2))
    ref2 = block_forward_ref(params2, x2)
    assert out2.shape == (N, C_OUT, H, W)
    assert jnp.allclose(out2, ref2, atol=2e-4, rtol=2e-4), "mismatch (identity)"

    print("KERNEL_OK")
</pallas_src>

<mosaic_0001>
module attributes {stable_mosaic.version = 11 : i64} {
  func.func @_block_kernel(%arg0: i32, %arg1: memref<1x16x64xf32, #tpu.memory_space<vmem>>, %arg2: memref<3x64x128xf32, #tpu.memory_space<vmem>>, %arg3: memref<1x128xf32, #tpu.memory_space<vmem>>, %arg4: memref<3x128x128xf32, #tpu.memory_space<vmem>>, %arg5: memref<1x128xf32, #tpu.memory_space<vmem>>, %arg6: memref<3x128x128xf32, #tpu.memory_space<vmem>>, %arg7: memref<1x128xf32, #tpu.memory_space<vmem>>, %arg8: memref<64x128xf32, #tpu.memory_space<vmem>>, %arg9: memref<1x16x128xf32, #tpu.memory_space<vmem>>, %arg10: memref<18x64xf32, #tpu.memory_space<vmem>>, %arg11: memref<18x128xf32, #tpu.memory_space<vmem>>, %arg12: memref<18x128xf32, #tpu.memory_space<vmem>>) attributes {dimension_semantics = [#tpu.dimension_semantics<parallel>], iteration_bounds = array<i64: 2>, scalar_prefetch = 0 : i64, scratch_operands = 3 : i64, tpu.core_type = #tpu.core_type<tc>, window_params = [{transform_indices = @transform_0, window_bounds = array<i64: 1, 16, 64>}, {pipeline_mode = #tpu.pipeline_mode<synchronous>, transform_indices = @transform_1, window_bounds = array<i64: 3, 64, 128>}, {pipeline_mode = #tpu.pipeline_mode<synchronous>, transform_indices = @transform_2, window_bounds = array<i64: 1, 128>}, {pipeline_mode = #tpu.pipeline_mode<synchronous>, transform_indices = @transform_3, window_bounds = array<i64: 3, 128, 128>}, {pipeline_mode = #tpu.pipeline_mode<synchronous>, transform_indices = @transform_4, window_bounds = array<i64: 1, 128>}, {pipeline_mode = #tpu.pipeline_mode<synchronous>, transform_indices = @transform_5, window_bounds = array<i64: 3, 128, 128>}, {pipeline_mode = #tpu.pipeline_mode<synchronous>, transform_indices = @transform_6, window_bounds = array<i64: 1, 128>}, {pipeline_mode = #tpu.pipeline_mode<synchronous>, transform_indices = @transform_7, window_bounds = array<i64: 64, 128>}, {transform_indices = @transform_8, window_bounds = array<i64: 1, 16, 128>}]} {
    %c0 = arith.constant 0 : index
    %c0_0 = arith.constant 0 : index
    %c0_1 = arith.constant 0 : index
    %0 = vector.load %arg1[%c0, %c0_0, %c0_1] : memref<1x16x64xf32, #tpu.memory_space<vmem>>, vector<1x16x64xf32>
    %1 = vector.shape_cast %0 : vector<1x16x64xf32> to vector<16x64xf32>
    %cst = arith.constant 0.000000e+00 : f32
    %2 = vector.broadcast %cst : f32 to vector<18x64xf32>
    %c0_2 = arith.constant 0 : index
    %c0_3 = arith.constant 0 : index
    %3 = vector.load %arg10[%c0_2, %c0_3] : memref<18x64xf32, #tpu.memory_space<vmem>>, vector<18x64xf32>
    tpu.vector_store %arg10[%c0_2, %c0_3], %2 {strides = array<i32>} : memref<18x64xf32, #tpu.memory_space<vmem>>, vector<18x64xf32>,
    %c1 = arith.constant 1 : index
    %c0_4 = arith.constant 0 : index
    %4 = vector.load %arg10[%c1, %c0_4] : memref<18x64xf32, #tpu.memory_space<vmem>>, vector<16x64xf32>
    tpu.vector_store %arg10[%c1, %c0_4], %1 {strides = array<i32>} : memref<18x64xf32, #tpu.memory_space<vmem>>, vector<16x64xf32>,
    %c0_5 = arith.constant 0 : index
    %c0_6 = arith.constant 0 : index
    %5 = vector.load %arg10[%c0_5, %c0_6] : memref<18x64xf32, #tpu.memory_space<vmem>>, vector<16x64xf32>
    %c0_7 = arith.constant 0 : index
    %c0_8 = arith.constant 0 : index
    %c0_9 = arith.constant 0 : index
    %6 = vector.load %arg2[%c0_7, %c0_8, %c0_9] : memref<3x64x128xf32, #tpu.memory_space<vmem>>, vector<1x64x128xf32>
    %7 = vector.shape_cast %6 : vector<1x64x128xf32> to vector<64x128xf32>
    %cst_10 = arith.constant dense<0.000000e+00> : vector<16x128xf32>
    %8 = tpu.matmul %5, %7, %cst_10 {dimension_numbers = #tpu.dot_dimension_numbers<[1], [0], [0], [1], [0, 0, 1, 1], [], []>} : vector<16x64xf32>, vector<64x128xf32>, vector<16x128xf32> -> vector<16x128xf32>
    %c1_11 = arith.constant 1 : index
    %c0_12 = arith.constant 0 : index
    %9 = vector.load %arg10[%c1_11, %c0_12] : memref<18x64xf32, #tpu.memory_space<vmem>>, vector<16x64xf32>
    %c1_13 = arith.constant 1 : index
    %c0_14 = arith.constant 0 : index
    %c0_15 = arith.constant 0 : index
    %10 = vector.load %arg2[%c1_13, %c0_14, %c0_15] : memref<3x64x128xf32, #tpu.memory_space<vmem>>, vector<1x64x128xf32>
    %11 = vector.shape_cast %10 : vector<1x64x128xf32> to vector<64x128xf32>
    %cst_16 = arith.constant dense<0.000000e+00> : vector<16x128xf32>
    %12 = tpu.matmul %9, %11, %cst_16 {dimension_numbers = #tpu.dot_dimension_numbers<[1], [0], [0], [1], [0, 0, 1, 1], [], []>} : vector<16x64xf32>, vector<64x128xf32>, vector<16x128xf32> -> vector<16x128xf32>
    %13 = arith.addf %8, %12 : vector<16x128xf32>
    %c2 = arith.constant 2 : index
    %c0_17 = arith.constant 0 : index
    %14 = vector.load %arg10[%c2, %c0_17] : memref<18x64xf32, #tpu.memory_space<vmem>>, vector<16x64xf32>
    %c2_18 = arith.constant 2 : index
    %c0_19 = arith.constant 0 : index
    %c0_20 = arith.constant 0 : index
    %15 = vector.load %arg2[%c2_18, %c0_19, %c0_20] : memref<3x64x128xf32, #tpu.memory_space<vmem>>, vector<1x64x128xf32>
    %16 = vector.shape_cast %15 : vector<1x64x128xf32> to vector<64x128xf32>
    %cst_21 = arith.constant dense<0.000000e+00> : vector<16x128xf32>
    %17 = tpu.matmul %14, %16, %cst_21 {dimension_numbers = #tpu.dot_dimension_numbers<[1], [0], [0], [1], [0, 0, 1, 1], [], []>} : vector<16x64xf32>, vector<64x128xf32>, vector<16x128xf32> -> vector<16x128xf32>
    %18 = arith.addf %13, %17 : vector<16x128xf32>
    %c0_22 = arith.constant 0 : index
    %c0_23 = arith.constant 0 : index
    %19 = vector.load %arg3[%c0_22, %c0_23] : memref<1x128xf32, #tpu.memory_space<vmem>>, vector<1x128xf32>
    %20 = vector.broadcast %19 : vector<1x128xf32> to vector<16x128xf32>
    %21 = arith.addf %18, %20 : vector<16x128xf32>
    %cst_24 = arith.constant 0.000000e+00 : f32
    %22 = vector.broadcast %cst_24 : f32 to vector<16x128xf32>
    %23 = arith.maximumf %21, %22 : vector<16x128xf32>
    %cst_25 = arith.constant 0.000000e+00 : f32
    %24 = vector.broadcast %cst_25 : f32 to vector<18x128xf32>
    %c0_26 = arith.constant 0 : index
    %c0_27 = arith.constant 0 : index
    %25 = vector.load %arg11[%c0_26, %c0_27] : memref<18x128xf32, #tpu.memory_space<vmem>>, vector<18x128xf32>
    tpu.vector_store %arg11[%c0_26, %c0_27], %24 {strides = array<i32>} : memref<18x128xf32, #tpu.memory_space<vmem>>, vector<18x128xf32>,
    %c1_28 = arith.constant 1 : index
    %c0_29 = arith.constant 0 : index
    %26 = vector.load %arg11[%c1_28, %c0_29] : memref<18x128xf32, #tpu.memory_space<vmem>>, vector<16x128xf32>
    tpu.vector_store %arg11[%c1_28, %c0_29], %23 {strides = array<i32>} : memref<18x128xf32, #tpu.memory_space<vmem>>, vector<16x128xf32>,
    %c0_30 = arith.constant 0 : index
    %c0_31 = arith.constant 0 : index
    %27 = vector.load %arg11[%c0_30, %c0_31] : memref<18x128xf32, #tpu.memory_space<vmem>>, vector<16x128xf32>
    %c0_32 = arith.constant 0 : index
    %c0_33 = arith.constant 0 : index
    %c0_34 = arith.constant 0 : index
    %28 = vector.load %arg4[%c0_32, %c0_33, %c0_34] : memref<3x128x128xf32, #tpu.memory_space<vmem>>, vector<1x128x128xf32>
    %29 = vector.shape_cast %28 : vector<1x128x128xf32> to vector<128x128xf32>
    %cst_35 = arith.constant dense<0.000000e+00> : vector<16x128xf32>
    %30 = tpu.matmul %27, %29, %cst_35 {dimension_numbers = #tpu.dot_dimension_numbers<[1], [0], [0], [1], [0, 0, 1, 1], [], []>} : vector<16x128xf32>, vector<128x128xf32>, vector<16x128xf32> -> vector<16x128xf32>
    %c1_36 = arith.constant 1 : index
    %c0_37 = arith.constant 0 : index
    %31 = vector.load %arg11[%c1_36, %c0_37] : memref<18x128xf32, #tpu.memory_space<vmem>>, vector<16x128xf32>
    %c1_38 = arith.constant 1 : index
    %c0_39 = arith.constant 0 : index
    %c0_40 = arith.constant 0 : index
    %32 = vector.load %arg4[%c1_38, %c0_39, %c0_40] : memref<3x128x128xf32, #tpu.memory_space<vmem>>, vector<1x128x128xf32>
    %33 = vector.shape_cast %32 : vector<1x128x128xf32> to vector<128x128xf32>
    %cst_41 = arith.constant dense<0.000000e+00> : vector<16x128xf32>
    %34 = tpu.matmul %31, %33, %cst_41 {dimension_numbers = #tpu.dot_dimension_numbers<[1], [0], [0], [1], [0, 0, 1, 1], [], []>} : vector<16x128xf32>, vector<128x128xf32>, vector<16x128xf32> -> vector<16x128xf32>
    %35 = arith.addf %30, %34 : vector<16x128xf32>
    %c2_42 = arith.constant 2 : index
    %c0_43 = arith.constant 0 : index
    %36 = vector.load %arg11[%c2_42, %c0_43] : memref<18x128xf32, #tpu.memory_space<vmem>>, vector<16x128xf32>
    %c2_44 = arith.constant 2 : index
    %c0_45 = arith.constant 0 : index
    %c0_46 = arith.constant 0 : index
    %37 = vector.load %arg4[%c2_44, %c0_45, %c0_46] : memref<3x128x128xf32, #tpu.memory_space<vmem>>, vector<1x128x128xf32>
    %38 = vector.shape_cast %37 : vector<1x128x128xf32> to vector<128x128xf32>
    %cst_47 = arith.constant dense<0.000000e+00> : vector<16x128xf32>
    %39 = tpu.matmul %36, %38, %cst_47 {dimension_numbers = #tpu.dot_dimension_numbers<[1], [0], [0], [1], [0, 0, 1, 1], [], []>} : vector<16x128xf32>, vector<128x128xf32>, vector<16x128xf32> -> vector<16x128xf32>
    %40 = arith.addf %35, %39 : vector<16x128xf32>
    %c0_48 = arith.constant 0 : index
    %c0_49 = arith.constant 0 : index
    %41 = vector.load %arg5[%c0_48, %c0_49] : memref<1x128xf32, #tpu.memory_space<vmem>>, vector<1x128xf32>
    %42 = vector.broadcast %41 : vector<1x128xf32> to vector<16x128xf32>
    %43 = arith.addf %40, %42 : vector<16x128xf32>
    %cst_50 = arith.constant 0.000000e+00 : f32
    %44 = vector.broadcast %cst_50 : f32 to vector<16x128xf32>
    %45 = arith.maximumf %43, %44 : vector<16x128xf32>
    %cst_51 = arith.constant 0.000000e+00 : f32
    %46 = vector.broadcast %cst_51 : f32 to vector<18x128xf32>
    %c0_52 = arith.constant 0 : index
    %c0_53 = arith.constant 0 : index
    %47 = vector.load %arg12[%c0_52, %c0_53] : memref<18x128xf32, #tpu.memory_space<vmem>>, vector<18x128xf32>
    tpu.vector_store %arg12[%c0_52, %c0_53], %46 {strides = array<i32>} : memref<18x128xf32, #tpu.memory_space<vmem>>, vector<18x128xf32>,
    %c1_54 = arith.constant 1 : index
    %c0_55 = arith.constant 0 : index
    %48 = vector.load %arg12[%c1_54, %c0_55] : memref<18x128xf32, #tpu.memory_space<vmem>>, vector<16x128xf32>
    tpu.vector_store %arg12[%c1_54, %c0_55], %45 {strides = array<i32>} : memref<18x128xf32, #tpu.memory_space<vmem>>, vector<16x128xf32>,
    %c0_56 = arith.constant 0 : index
    %c0_57 = arith.constant 0 : index
    %49 = vector.load %arg12[%c0_56, %c0_57] : memref<18x128xf32, #tpu.memory_space<vmem>>, vector<16x128xf32>
    %c0_58 = arith.constant 0 : index
    %c0_59 = arith.constant 0 : index
    %c0_60 = arith.constant 0 : index
    %50 = vector.load %arg6[%c0_58, %c0_59, %c0_60] : memref<3x128x128xf32, #tpu.memory_space<vmem>>, vector<1x128x128xf32>
    %51 = vector.shape_cast %50 : vector<1x128x128xf32> to vector<128x128xf32>
    %cst_61 = arith.constant dense<0.000000e+00> : vector<16x128xf32>
    %52 = tpu.matmul %49, %51, %cst_61 {dimension_numbers = #tpu.dot_dimension_numbers<[1], [0], [0], [1], [0, 0, 1, 1], [], []>} : vector<16x128xf32>, vector<128x128xf32>, vector<16x128xf32> -> vector<16x128xf32>
    %c1_62 = arith.constant 1 : index
    %c0_63 = arith.constant 0 : index
    %53 = vector.load %arg12[%c1_62, %c0_63] : memref<18x128xf32, #tpu.memory_space<vmem>>, vector<16x128xf32>
    %c1_64 = arith.constant 1 : index
    %c0_65 = arith.constant 0 : index
    %c0_66 = arith.constant 0 : index
    %54 = vector.load %arg6[%c1_64, %c0_65, %c0_66] : memref<3x128x128xf32, #tpu.memory_space<vmem>>, vector<1x128x128xf32>
    %55 = vector.shape_cast %54 : vector<1x128x128xf32> to vector<128x128xf32>
    %cst_67 = arith.constant dense<0.000000e+00> : vector<16x128xf32>
    %56 = tpu.matmul %53, %55, %cst_67 {dimension_numbers = #tpu.dot_dimension_numbers<[1], [0], [0], [1], [0, 0, 1, 1], [], []>} : vector<16x128xf32>, vector<128x128xf32>, vector<16x128xf32> -> vector<16x128xf32>
    %57 = arith.addf %52, %56 : vector<16x128xf32>
    %c2_68 = arith.constant 2 : index
    %c0_69 = arith.constant 0 : index
    %58 = vector.load %arg12[%c2_68, %c0_69] : memref<18x128xf32, #tpu.memory_space<vmem>>, vector<16x128xf32>
    %c2_70 = arith.constant 2 : index
    %c0_71 = arith.constant 0 : index
    %c0_72 = arith.constant 0 : index
    %59 = vector.load %arg6[%c2_70, %c0_71, %c0_72] : memref<3x128x128xf32, #tpu.memory_space<vmem>>, vector<1x128x128xf32>
    %60 = vector.shape_cast %59 : vector<1x128x128xf32> to vector<128x128xf32>
    %cst_73 = arith.constant dense<0.000000e+00> : vector<16x128xf32>
    %61 = tpu.matmul %58, %60, %cst_73 {dimension_numbers = #tpu.dot_dimension_numbers<[1], [0], [0], [1], [0, 0, 1, 1], [], []>} : vector<16x128xf32>, vector<128x128xf32>, vector<16x128xf32> -> vector<16x128xf32>
    %62 = arith.addf %57, %61 : vector<16x128xf32>
    %c0_74 = arith.constant 0 : index
    %c0_75 = arith.constant 0 : index
    %63 = vector.load %arg7[%c0_74, %c0_75] : memref<1x128xf32, #tpu.memory_space<vmem>>, vector<1x128xf32>
    %64 = vector.broadcast %63 : vector<1x128xf32> to vector<16x128xf32>
    %65 = arith.addf %62, %64 : vector<16x128xf32>
    %c0_76 = arith.constant 0 : index
    %c0_77 = arith.constant 0 : index
    %66 = vector.load %arg8[%c0_76, %c0_77] : memref<64x128xf32, #tpu.memory_space<vmem>>, vector<64x128xf32>
    %cst_78 = arith.constant dense<0.000000e+00> : vector<16x128xf32>
    %67 = tpu.matmul %1, %66, %cst_78 {dimension_numbers = #tpu.dot_dimension_numbers<[1], [0], [0], [1], [0, 0, 1, 1], [], []>} : vector<16x64xf32>, vector<64x128xf32>, vector<16x128xf32> -> vector<16x128xf32>
    %68 = arith.addf %65, %67 : vector<16x128xf32>
    %cst_79 = arith.constant 0.000000e+00 : f32
    %69 = vector.broadcast %cst_79 : f32 to vector<16x128xf32>
    %70 = arith.maximumf %68, %69 : vector<16x128xf32>
    %c0_80 = arith.constant 0 : index
    %c0_81 = arith.constant 0 : index
    %c0_82 = arith.constant 0 : index
    %71 = vector.load %arg9[%c0_80, %c0_81, %c0_82] : memref<1x16x128xf32, #tpu.memory_space<vmem>>, vector<1x16x128xf32>
    %72 = vector.shape_cast %71 : vector<1x16x128xf32> to vector<16x128xf32>
    %73 = vector.shape_cast %70 : vector<16x128xf32> to vector<1x16x128xf32>
    tpu.vector_store %arg9[%c0_80, %c0_81, %c0_82], %73 {strides = array<i32>} : memref<1x16x128xf32, #tpu.memory_space<vmem>>, vector<1x16x128xf32>,
    return
  }
  func.func @transform_0(%arg0: i32) -> (i32, i32, i32) {
    %c0_i32 = arith.constant 0 : i32
    %c0_i32_0 = arith.constant 0 : i32
    %c0_i32_1 = arith.constant 0 : i32
    return %arg0, %c0_i32, %c0_i32_0 : i32, i32, i32
  }
  func.func @transform_1(%arg0: i32) -> (i32, i32, i32) {
    %c0_i32 = arith.constant 0 : i32
    %c0_i32_0 = arith.constant 0 : i32
    %c0_i32_1 = arith.constant 0 : i32
    %c0_i32_2 = arith.constant 0 : i32
    return %c0_i32, %c0_i32_0, %c0_i32_1 : i32, i32, i32
  }
  func.func @transform_2(%arg0: i32) -> (i32, i32) {
    %c0_i32 = arith.constant 0 : i32
    %c0_i32_0 = arith.constant 0 : i32
    %c0_i32_1 = arith.constant 0 : i32
    return %c0_i32, %c0_i32_0 : i32, i32
  }
  func.func @transform_3(%arg0: i32) -> (i32, i32, i32) {
    %c0_i32 = arith.constant 0 : i32
    %c0_i32_0 = arith.constant 0 : i32
    %c0_i32_1 = arith.constant 0 : i32
    %c0_i32_2 = arith.constant 0 : i32
    return %c0_i32, %c0_i32_0, %c0_i32_1 : i32, i32, i32
  }
  func.func @transform_4(%arg0: i32) -> (i32, i32) {
    %c0_i32 = arith.constant 0 : i32
    %c0_i32_0 = arith.constant 0 : i32
    %c0_i32_1 = arith.constant 0 : i32
    return %c0_i32, %c0_i32_0 : i32, i32
  }
  func.func @transform_5(%arg0: i32) -> (i32, i32, i32) {
    %c0_i32 = arith.constant 0 : i32
    %c0_i32_0 = arith.constant 0 : i32
    %c0_i32_1 = arith.constant 0 : i32
    %c0_i32_2 = arith.constant 0 : i32
    return %c0_i32, %c0_i32_0, %c0_i32_1 : i32, i32, i32
  }
  func.func @transform_6(%arg0: i32) -> (i32, i32) {
    %c0_i32 = arith.constant 0 : i32
    %c0_i32_0 = arith.constant 0 : i32
    %c0_i32_1 = arith.constant 0 : i32
    return %c0_i32, %c0_i32_0 : i32, i32
  }
  func.func @transform_7(%arg0: i32) -> (i32, i32) {
    %c0_i32 = arith.constant 0 : i32
    %c0_i32_0 = arith.constant 0 : i32
    %c0_i32_1 = arith.constant 0 : i32
    return %c0_i32, %c0_i32_0 : i32, i32
  }
  func.func @transform_8(%arg0: i32) -> (i32, i32, i32) {
    %c0_i32 = arith.constant 0 : i32
    %c0_i32_0 = arith.constant 0 : i32
    %c0_i32_1 = arith.constant 0 : i32
    return %arg0, %c0_i32, %c0_i32_0 : i32, i32, i32
  }
}

</mosaic_0001>

<llo_original>
// kernel: tpu_custom_call.1
$region0: #{tpu_custom_call.1}
  #allocation0 [shape = 'u32[]', space=smem, size = 0x4, offset = 0x4, fixed_abs, tag = 'smem constant byte address 0x4 - core index']
  #allocation1 [shape = 'u32[144,128]{1,0:T(1,128)}', space=vmem, size = 0x12000, scoped, tag = 'internal scratch']
  #allocation2 [shape = 'f32[18,64]{1,0:T(8,128)}', space=vmem, size = 0x3000, scoped, tag = 'scratch operand']
  #allocation3 [shape = 'f32[18,128]{1,0:T(8,128)}', space=vmem, size = 0x3000, scoped, tag = 'scratch operand']
  #allocation4 [shape = 'f32[18,128]{1,0:T(8,128)}', space=vmem, size = 0x3000, scoped, tag = 'scratch operand']
  %s0 = inlined_call_operand.hbm [shape: f32[2,16,64], index: 0, kind: input, shape index: {}]
  %s1 = inlined_call_operand.hbm [shape: f32[3,64,128], index: 1, kind: input, shape index: {}]
  %s2 = inlined_call_operand.vmem [shape: f32[1,128], index: 2, kind: input, shape index: {}]
  %s3 = inlined_call_operand.hbm [shape: f32[3,128,128], index: 3, kind: input, shape index: {}]
  %s4 = inlined_call_operand.vmem [shape: f32[1,128], index: 4, kind: input, shape index: {}]
  %s5 = inlined_call_operand.hbm [shape: f32[3,128,128], index: 5, kind: input, shape index: {}]
  %s6 = inlined_call_operand.vmem [shape: f32[1,128], index: 6, kind: input, shape index: {}]
  %s7 = inlined_call_operand.hbm [shape: f32[64,128], index: 7, kind: input, shape index: {}]
  %s8 = inlined_call_operand.hbm [shape: f32[2,16,128], index: 8, kind: output, shape index: {}]
  %s9 = sld [smem:[#allocation0]]
  $region85: #{tpu_custom_call.1} parent=0
    _
  %s11 = ssub.s32 1, %s9
  %s12 = scalar_select 0, %s11, %s9
  $region1: #{tpu_custom_call.1} parent=0
    #allocation5 [shape = 'u8[16384]{0}', space=vmem, size = 0x4000, scoped, tag = 'input window, operand 0']
    #allocation6 [shape = 's32[2]{0}', space=sflag, size = 0x8, scoped, tag = 'scoped memory for tpu_custom_call.1']
    #allocation7 [shape = 's32[2]{0}', space=sflag, size = 0x8, scoped, tag = 'scoped memory for tpu_custom_call.1']
    #allocation8 [shape = 'u8[98304]{0}', space=vmem, size = 0x18000, scoped, tag = 'input window, operand 1, single buffered']
    #allocation9 [shape = 's32[1]{0}', space=sflag, size = 0x4, scoped, tag = 'scoped memory for tpu_custom_call.1']
    #allocation10 [shape = 'u8[196608]{0}', space=vmem, size = 0x30000, scoped, tag = 'input window, operand 3, single buffered']
    #allocation11 [shape = 'u8[196608]{0}', space=vmem, size = 0x30000, scoped, tag = 'input window, operand 5, single buffered']
    #allocation12 [shape = 's32[1]{0}', space=sflag, size = 0x4, scoped, tag = 'scoped memory for tpu_custom_call.1']
    #allocation13 [shape = 'u8[32768]{0}', space=vmem, size = 0x8000, scoped, tag = 'input window, operand 7, single buffered']
    #allocation14 [shape = 'u8[16384]{0}', space=vmem, size = 0x4000, scoped, tag = 'output window, operand 0']
    %13 = vsyncpa [#allocation6], 0
    %s14 = scalar_lea.sflag [#allocation6], 1
    %15 = vsyncpa %s14, 0
    %16 = vsyncpa [#allocation9], 0
    %17 = vsyncpa [#allocation12], 0
    %18 = vsyncpa [#allocation7], 0
    %s19 = scalar_lea.sflag [#allocation7], 1
    %20 = vsyncpa %s19, 0
    loop: start=0, step=1, limit=4
    $region2: #{tpu_custom_call.1} parent=1 // loop_pre_header
      _
    $region3: #{tpu_custom_call.1} parent=1 // loop_header
      %s22 = sphi 0, %s26
      %p23 = scmp.ge.s32.totalorder %s22, 4
      %s32 = sphi 0, %s34
      %s35 = sphi 0, %s32
      %s36 = sphi 0, %s35
      %s52 = sphi 0, %s36
      %s56 = sphi 0, %s56
      %s58 = sphi 0, %s56
      %s59 = sphi 0, %s58
      %s73 = sphi 0, %s59
      %s77 = sphi 0, %s77
      %s79 = sphi 0, %s77
      %s80 = sphi 0, %s79
      %s94 = sphi 0, %s80
      %s98 = sphi 0, %s98
      %s100 = sphi 0, %s98
      %s101 = sphi 0, %s100
      %s115 = sphi 0, %s101
      %s119 = sphi 0, %s119
      %s121 = sphi 0, %s119
      %s122 = sphi 0, %s121
      %s136 = sphi 0, %s122
      %s140 = sphi 0, %s140
      %s142 = sphi 0, %s140
      %s143 = sphi 0, %s142
      %s157 = sphi 0, %s143
      %s161 = sphi 0, %s161
      %s163 = sphi 0, %s161
      %s164 = sphi 0, %s163
      %s178 = sphi 0, %s164
      %s182 = sphi 0, %s182
      %s184 = sphi 0, %s182
      %s185 = sphi 0, %s184
      %s199 = sphi 0, %s185
      %s205 = sphi 0, %s207
      %s208 = sphi 0, %s205
      %s209 = sphi 0, %s208
      %s225 = sphi 0, %s209
    $region4: #{tpu_custom_call.1} parent=1 // loop_header_branch
      %25 = sbr.rel (%p23) target = $region8
    $region5: #{tpu_custom_call.1} parent=1 // loop_body
      %s27 = ssub.s32 %s22, 1
      %s28 = ssub.s32 %s22, 2
      %s29 = sadd.s32 %s22, 1
      %s30 = ssub.s32 %s22, %s29
      %p31 = scmp.eq.s32.totalorder %s30, 0
      %s33 = sadd.s32 %s32, 1
      %s34 = scalar_select %p31, %s32, %s33
      %p37 = pneg %p31
      %p38 = scmp.eq.s32.totalorder %s22, 1
      %p39 = por %p37, %p38
      %p40 = scmp.ne.s32.totalorder %s32, %s35
      %p41 = scmp.eq.s32.totalorder %s22, 0
      %p42 = por %p40, %p41
      %p43 = scmp.ne.s32.totalorder %s32, %s35
      %p44 = scmp.eq.s32.totalorder %s27, 1
      %p45 = por %p43, %p44
      %p46 = scmp.ne.s32.totalorder %s35, %s36
      %p47 = scmp.eq.s32.totalorder %s27, 0
      %p48 = por %p46, %p47
      %p49 = scmp.ne.s32.totalorder %s35, %s36
      %p50 = scmp.eq.s32.totalorder %s28, 1
      %p51 = por %p49, %p50
      %p53 = scmp.ne.s32.totalorder %s36, %s52
      %p54 = scmp.eq.s32.totalorder %s28, 0
      %p55 = por %p53, %p54
      %s57 = sadd.s32 %s56, 1
      %p60 = scmp.eq.s32.totalorder %s22, 1
      %p61 = scmp.ne.s32.totalorder %s56, %s58
      %p62 = scmp.eq.s32.totalorder %s22, 0
      %p63 = por %p61, %p62
      %p64 = scmp.ne.s32.totalorder %s56, %s58
      %p65 = scmp.eq.s32.totalorder %s27, 1
      %p66 = por %p64, %p65
      %p67 = scmp.ne.s32.totalorder %s58, %s59
      %p68 = scmp.eq.s32.totalorder %s27, 0
      %p69 = por %p67, %p68
      %p70 = scmp.ne.s32.totalorder %s58, %s59
      %p71 = scmp.eq.s32.totalorder %s28, 1
      %p72 = por %p70, %p71
      %p74 = scmp.ne.s32.totalorder %s59, %s73
      %p75 = scmp.eq.s32.totalorder %s28, 0
      %p76 = por %p74, %p75
      %s78 = sadd.s32 %s77, 1
      %p81 = scmp.eq.s32.totalorder %s22, 1
      %p82 = scmp.ne.s32.totalorder %s77, %s79
      %p83 = scmp.eq.s32.totalorder %s22, 0
      %p84 = por %p82, %p83
      %p85 = scmp.ne.s32.totalorder %s77, %s79
      %p86 = scmp.eq.s32.totalorder %s27, 1
      %p87 = por %p85, %p86
      %p88 = scmp.ne.s32.totalorder %s79, %s80
      %p89 = scmp.eq.s32.totalorder %s27, 0
      %p90 = por %p88, %p89
      %p91 = scmp.ne.s32.totalorder %s79, %s80
      %p92 = scmp.eq.s32.totalorder %s28, 1
      %p93 = por %p91, %p92
      %p95 = scmp.ne.s32.totalorder %s80, %s94
      %p96 = scmp.eq.s32.totalorder %s28, 0
      %p97 = por %p95, %p96
      %s99 = sadd.s32 %s98, 1
      %p102 = scmp.eq.s32.totalorder %s22, 1
      %p103 = scmp.ne.s32.totalorder %s98, %s100
      %p104 = scmp.eq.s32.totalorder %s22, 0
      %p105 = por %p103, %p104
      %p106 = scmp.ne.s32.totalorder %s98, %s100
      %p107 = scmp.eq.s32.totalorder %s27, 1
      %p108 = por %p106, %p107
      %p109 = scmp.ne.s32.totalorder %s100, %s101
      %p110 = scmp.eq.s32.totalorder %s27, 0
      %p111 = por %p109, %p110
      %p112 = scmp.ne.s32.totalorder %s100, %s101
      %p113 = scmp.eq.s32.totalorder %s28, 1
      %p114 = por %p112, %p113
      %p116 = scmp.ne.s32.totalorder %s101, %s115
      %p117 = scmp.eq.s32.totalorder %s28, 0
      %p118 = por %p116, %p117
      %s120 = sadd.s32 %s119, 1
      %p123 = scmp.eq.s32.totalorder %s22, 1
      %p124 = scmp.ne.s32.totalorder %s119, %s121
      %p125 = scmp.eq.s32.totalorder %s22, 0
      %p126 = por %p124, %p125
      %p127 = scmp.ne.s32.totalorder %s119, %s121
      %p128 = scmp.eq.s32.totalorder %s27, 1
      %p129 = por %p127, %p128
      %p130 = scmp.ne.s32.totalorder %s121, %s122
      %p131 = scmp.eq.s32.totalorder %s27, 0
      %p132 = por %p130, %p131
      %p133 = scmp.ne.s32.totalorder %s121, %s122
      %p134 = scmp.eq.s32.totalorder %s28, 1
      %p135 = por %p133, %p134
      %p137 = scmp.ne.s32.totalorder %s122, %s136
      %p138 = scmp.eq.s32.totalorder %s28, 0
      %p139 = por %p137, %p138
      %s141 = sadd.s32 %s140, 1
      %p144 = scmp.eq.s32.totalorder %s22, 1
      %p145 = scmp.ne.s32.totalorder %s140, %s142
      %p146 = scmp.eq.s32.totalorder %s22, 0
      %p147 = por %p145, %p146
      %p148 = scmp.ne.s32.totalorder %s140, %s142
      %p149 = scmp.eq.s32.totalorder %s27, 1
      %p150 = por %p148, %p149
      %p151 = scmp.ne.s32.totalorder %s142, %s143
      %p152 = scmp.eq.s32.totalorder %s27, 0
      %p153 = por %p151, %p152
      %p154 = scmp.ne.s32.totalorder %s142, %s143
      %p155 = scmp.eq.s32.totalorder %s28, 1
      %p156 = por %p154, %p155
      %p158 = scmp.ne.s32.totalorder %s143, %s157
      %p159 = scmp.eq.s32.totalorder %s28, 0
      %p160 = por %p158, %p159
      %s162 = sadd.s32 %s161, 1
      %p165 = scmp.eq.s32.totalorder %s22, 1
      %p166 = scmp.ne.s32.totalorder %s161, %s163
      %p167 = scmp.eq.s32.totalorder %s22, 0
      %p168 = por %p166, %p167
      %p169 = scmp.ne.s32.totalorder %s161, %s163
      %p170 = scmp.eq.s32.totalorder %s27, 1
      %p171 = por %p169, %p170
      %p172 = scmp.ne.s32.totalorder %s163, %s164
      %p173 = scmp.eq.s32.totalorder %s27, 0
      %p174 = por %p172, %p173
      %p175 = scmp.ne.s32.totalorder %s163, %s164
      %p176 = scmp.eq.s32.totalorder %s28, 1
      %p177 = por %p175, %p176
      %p179 = scmp.ne.s32.totalorder %s164, %s178
      %p180 = scmp.eq.s32.totalorder %s28, 0
      %p181 = por %p179, %p180
      %s183 = sadd.s32 %s182, 1
      %p186 = scmp.eq.s32.totalorder %s22, 1
      %p187 = scmp.ne.s32.totalorder %s182, %s184
      %p188 = scmp.eq.s32.totalorder %s22, 0
      %p189 = por %p187, %p188
      %p190 = scmp.ne.s32.totalorder %s182, %s184
      %p191 = scmp.eq.s32.totalorder %s27, 1
      %p192 = por %p190, %p191
      %p193 = scmp.ne.s32.totalorder %s184, %s185
      %p194 = scmp.eq.s32.totalorder %s27, 0
      %p195 = por %p193, %p194
      %p196 = scmp.ne.s32.totalorder %s184, %s185
      %p197 = scmp.eq.s32.totalorder %s28, 1
      %p198 = por %p196, %p197
      %p200 = scmp.ne.s32.totalorder %s185, %s199
      %p201 = scmp.eq.s32.totalorder %s28, 0
      %p202 = por %p200, %p201
      %s203 = ssub.s32 %s22, %s29
      %p204 = scmp.eq.s32.totalorder %s203, 0
      %s206 = sadd.s32 %s205, 1
      %s207 = scalar_select %p204, %s205, %s206
      %p210 = pneg %p204
      %p211 = scmp.eq.s32.totalorder %s22, 1
      %p212 = por %p210, %p211
      %p213 = scmp.ne.s32.totalorder %s205, %s208
      %p214 = scmp.eq.s32.totalorder %s22, 0
      %p215 = por %p213, %p214
      %p216 = scmp.ne.s32.totalorder %s205, %s208
      %p217 = scmp.eq.s32.totalorder %s27, 1
      %p218 = por %p216, %p217
      %p219 = scmp.ne.s32.totalorder %s208, %s209
      %p220 = scmp.eq.s32.totalorder %s27, 0
      %p221 = por %p219, %p220
      %p222 = scmp.ne.s32.totalorder %s208, %s209
      %p223 = scmp.eq.s32.totalorder %s28, 1
      %p224 = por %p222, %p223
      %p226 = scmp.ne.s32.totalorder %s209, %s225
      %p227 = scmp.eq.s32.totalorder %s28, 0
      %p228 = por %p226, %p227
      %p229 = scmp.le.s32.totalorder 1, %s22
      %p230 = scmp.lt.s32.totalorder %s22, 3
      %p231 = pnand %p229, %p230
      %p232 = pneg %p231
      // Predicated region
      $region9: #{tpu_custom_call.1} parent=5 // pred_check
        _
      $region10: #{tpu_custom_call.1} parent=5 // pred_check_branch
        %234 = sbr.rel (%p231) target = $region12
      $region11: #{tpu_custom_call.1} parent=5 // pred_region
        %s235 = ssub.s32 %s22, 1
        // Predicated region
        $region13: #{tpu_custom_call.1} parent=11 // pred_check
          %p236 = pneg %p69
        $region14: #{tpu_custom_call.1} parent=11 // pred_check_branch
          %238 = sbr.rel (%p236) target = $region16
        $region15: #{tpu_custom_call.1} parent=11 // pred_region
          %s240 = ssub.s32 3072, 3072
          %241 = vsyncadd [#allocation9], %s240
          %s242 = sshll.u32 [#allocation8], 4
          %s243 = int_to_ptr.vmem [resolvable:$true] %s242
          %248 = dma.hbm_to_vmem [thread:$0]  %s1, 3072, %s243, [#allocation9], 128, 128, 8
        $region16: #{tpu_custom_call.1} parent=11 // pred_fallthru
          _
        // Predicated region
        $region17: #{tpu_custom_call.1} parent=11 // pred_check
          %p249 = pneg %p90
        $region18: #{tpu_custom_call.1} parent=11 // pred_check_branch
          %251 = sbr.rel (%p249) target = $region20
        $region19: #{tpu_custom_call.1} parent=11 // pred_region
          _
        $region20: #{tpu_custom_call.1} parent=11 // pred_fallthru
          _
        // Predicated region
        $region21: #{tpu_custom_call.1} parent=11 // pred_check
          %p252 = pneg %p111
        $region22: #{tpu_custom_call.1} parent=11 // pred_check_branch
          %254 = sbr.rel (%p252) target = $region24
        $region23: #{tpu_custom_call.1} parent=11 // pred_region
          %s256 = ssub.s32 6144, 6144
          %257 = vsyncadd [#allocation9], %s256
          %s258 = sshll.u32 [#allocation10], 4
          %s259 = int_to_ptr.vmem [resolvable:$true] %s258
          %264 = dma.hbm_to_vmem [thread:$0]  %s3, 6144, %s259, [#allocation9], 128, 128, 8
        $region24: #{tpu_custom_call.1} parent=11 // pred_fallthru
          _
        // Predicated region
        $region25: #{tpu_custom_call.1} parent=11 // pred_check
          %p265 = pneg %p132
        $region26: #{tpu_custom_call.1} parent=11 // pred_check_branch
          %267 = sbr.rel (%p265) target = $region28
        $region27: #{tpu_custom_call.1} parent=11 // pred_region
          _
        $region28: #{tpu_custom_call.1} parent=11 // pred_fallthru
          _
        // Predicated region
        $region29: #{tpu_custom_call.1} parent=11 // pred_check
          %p268 = pneg %p153
        $region30: #{tpu_custom_call.1} parent=11 // pred_check_branch
          %270 = sbr.rel (%p268) target = $region32
        $region31: #{tpu_custom_call.1} parent=11 // pred_region
          %s272 = ssub.s32 6144, 6144
          %273 = vsyncadd [#allocation12], %s272
          %s274 = sshll.u32 [#allocation11], 4
          %s275 = int_to_ptr.vmem [resolvable:$true] %s274
          %280 = dma.hbm_to_vmem [thread:$0]  %s5, 6144, %s275, [#allocation12], 128, 128, 8
        $region32: #{tpu_custom_call.1} parent=11 // pred_fallthru
          _
        // Predicated region
        $region33: #{tpu_custom_call.1} parent=11 // pred_check
          %p281 = pneg %p174
        $region34: #{tpu_custom_call.1} parent=11 // pred_check_branch
          %283 = sbr.rel (%p281) target = $region36
        $region35: #{tpu_custom_call.1} parent=11 // pred_region
          _
        $region36: #{tpu_custom_call.1} parent=11 // pred_fallthru
          _
        // Predicated region
        $region37: #{tpu_custom_call.1} parent=11 // pred_check
          %p284 = pneg %p195
        $region38: #{tpu_custom_call.1} parent=11 // pred_check_branch
          %286 = sbr.rel (%p284) target = $region40
        $region39: #{tpu_custom_call.1} parent=11 // pred_region
          %s288 = ssub.s32 1024, 1024
          %289 = vsyncadd [#allocation12], %s288
          %s290 = sshll.u32 [#allocation13], 4
          %s291 = int_to_ptr.vmem [resolvable:$true] %s290
          %296 = dma.hbm_to_vmem [thread:$0]  %s7, 1024, %s291, [#allocation12], 128, 128, 8
        $region40: #{tpu_custom_call.1} parent=11 // pred_fallthru
          _
      $region12: #{tpu_custom_call.1} parent=5 // pred_fallthru
        _
      %p297 = scmp.lt.s32.totalorder %s22, 2
      // Predicated region
      $region41: #{tpu_custom_call.1} parent=5 // pred_check
        %p298 = pneg %p297
      $region42: #{tpu_custom_call.1} parent=5 // pred_check_branch
        %300 = sbr.rel (%p298) target = $region44
      $region43: #{tpu_custom_call.1} parent=5 // pred_region
        // Predicated region
        $region45: #{tpu_custom_call.1} parent=43 // pred_check
          %p301 = pneg %p42
        $region46: #{tpu_custom_call.1} parent=43 // pred_check_branch
          %303 = sbr.rel (%p301) target = $region48
        $region47: #{tpu_custom_call.1} parent=43 // pred_region
          %s304 = sand.u32 %s32, 1
          %s305 = scalar_lea.sflag [#allocation6], %s304
          %s306 = sand.u32 %s32, 1
          %s307 = smul.addr %s306, 16
          %s308 = scalar_lea.vmem [#allocation5], %s307
          %s310 = ssub.s32 256, 256
          %311 = vsyncadd %s305, %s310
          %s312 = smul.addr %s22, 2
          %s313 = smul.addr %s312, 128
          %s314 = scalar_lea.hbm %s0, %s313
          %s315 = sshll.u32 %s308, 4
          %s316 = int_to_ptr.vmem [resolvable:$true] %s315
          %321 = dma.hbm_to_vmem [thread:$0]  %s314, 256, %s316, %s305, 128, 128, 8
        $region48: #{tpu_custom_call.1} parent=43 // pred_fallthru
          _
      $region44: #{tpu_custom_call.1} parent=5 // pred_fallthru
        _
      %p322 = scmp.le.s32.totalorder 1, %s22
      %p323 = scmp.lt.s32.totalorder %s22, 3
      %p324 = pnand %p322, %p323
      %p325 = pneg %p324
      // Predicated region
      $region49: #{tpu_custom_call.1} parent=5 // pred_check
        _
      $region50: #{tpu_custom_call.1} parent=5 // pred_check_branch
        %327 = sbr.rel (%p324) target = $region52
      $region51: #{tpu_custom_call.1} parent=5 // pred_region
        %s328 = ssub.s32 %s22, 1
        %s329 = sand.u32 %s35, 1
        %s330 = scalar_lea.sflag [#allocation6], %s329
        %s331 = sand.u32 %s35, 1
        %s332 = smul.addr %s331, 16
        %s333 = scalar_lea.vmem [#allocation5], %s332
        // Predicated region
        $region53: #{tpu_custom_call.1} parent=51 // pred_check
          %p334 = pneg %p48
        $region54: #{tpu_custom_call.1} parent=51 // pred_check_branch
          %336 = sbr.rel (%p334) target = $region56
        $region55: #{tpu_custom_call.1} parent=51 // pred_region
          %337 = dma.done %s330, 256
        $region56: #{tpu_custom_call.1} parent=51 // pred_fallthru
          _
        // Predicated region
        $region57: #{tpu_custom_call.1} parent=51 // pred_check
          %p338 = pneg %p69
        $region58: #{tpu_custom_call.1} parent=51 // pred_check_branch
          %340 = sbr.rel (%p338) target = $region60
        $region59: #{tpu_custom_call.1} parent=51 // pred_region
          %341 = dma.done [#allocation9], 3072
        $region60: #{tpu_custom_call.1} parent=51 // pred_fallthru
          _
        // Predicated region
        $region61: #{tpu_custom_call.1} parent=51 // pred_check
          %p342 = pneg %p111
        $region62: #{tpu_custom_call.1} parent=51 // pred_check_branch
          %344 = sbr.rel (%p342) target = $region64
        $region63: #{tpu_custom_call.1} parent=51 // pred_region
          %345 = dma.done [#allocation9], 6144
        $region64: #{tpu_custom_call.1} parent=51 // pred_fallthru
          _
        // Predicated region
        $region65: #{tpu_custom_call.1} parent=51 // pred_check
          %p346 = pneg %p153
        $region66: #{tpu_custom_call.1} parent=51 // pred_check_branch
          %348 = sbr.rel (%p346) target = $region68
        $region67: #{tpu_custom_call.1} parent=51 // pred_region
          %349 = dma.done [#allocation12], 6144
        $region68: #{tpu_custom_call.1} parent=51 // pred_fallthru
          _
        // Predicated region
        $region69: #{tpu_custom_call.1} parent=51 // pred_check
          %p350 = pneg %p195
        $region70: #{tpu_custom_call.1} parent=51 // pred_check_branch
          %352 = sbr.rel (%p350) target = $region72
        $region71: #{tpu_custom_call.1} parent=51 // pred_region
          %353 = dma.done [#allocation12], 1024
        $region72: #{tpu_custom_call.1} parent=51 // pred_fallthru
          _
        %s354 = sand.u32 %s35, 1
        %s355 = scalar_lea.sflag [#allocation6], %s354
        %s356 = sand.u32 %s35, 1
        %s357 = smul.addr %s356, 16
        %s358 = scalar_lea.vmem [#allocation5], %s357
        %p359 = pneg %p48
        %p360 = pneg %p45
        %p361 = pneg %p69
        %p362 = pneg %p66
        %p363 = pneg %p90
        %p364 = pneg %p87
        %p365 = pneg %p111
        %p366 = pneg %p108
        %p367 = pneg %p132
        %p368 = pneg %p129
        %p369 = pneg %p153
        %p370 = pneg %p150
        %p371 = pneg %p174
        %p372 = pneg %p171
        %p373 = pneg %p195
        %p374 = pneg %p192
        %p375 = pneg %p221
        %p376 = pneg %p218
        %s377 = sand.u32 %s208, 1
        %s378 = scalar_lea.sflag [#allocation7], %s377
        %s379 = sand.u32 %s208, 1
        %s380 = smul.addr %s379, 16
        %s381 = scalar_lea.vmem [#allocation14], %s380
        %v382 = vld [vmem:[%s333] sm:$0xff]
        %v383 = vld [vmem:[%s333 + $0x8] sm:$0xff]
        %vm384 = vcmask 523264
        %385 = vst.msk [vmem:[#allocation2] sm:$0xff] %vm384, 0.0
        %386 = vst.msk [vmem:[#allocation2 + $0x8] sm:$0xff] %vm384, 0.0
        %vm387 = vcmask 517120
        %388 = vst.msk [vmem:[#allocation2 + $0x10] sm:$0x3] %vm387, 0.0
        %389 = vst.msk [vmem:[#allocation2 + $0x1] sm:$0xff] %vm384, %v382
        %390 = vst.msk [vmem:[#allocation2 + $0x9] sm:$0xff] %vm384, %v383
        %v391 = vld [vmem:[#allocation2] sm:$0xff]
        %v392 = vld [vmem:[#allocation2 + $0x8] sm:$0xff]
        %v393 = vld [vmem:[#allocation8] sm:$0xff]
        %v394 = vld [vmem:[#allocation8 + $0x8] sm:$0xff]
        %v395 = vld [vmem:[#allocation8 + $0x10] sm:$0xff]
        %v396 = vld [vmem:[#allocation8 + $0x18] sm:$0xff]
        %v397 = vld [vmem:[#allocation8 + $0x20] sm:$0xff]
        %v398 = vld [vmem:[#allocation8 + $0x28] sm:$0xff]
        %v399 = vld [vmem:[#allocation8 + $0x30] sm:$0xff]
        %v400 = vld [vmem:[#allocation8 + $0x38] sm:$0xff]
        %v401 = vld [vmem:[#allocation2 + $0x1] sm:$0xff]
        %v402 = vld [vmem:[#allocation2 + $0x9] sm:$0xff]
        %s403 = scalar_lea.vmem [#allocation8], 64
        %v404 = vld [vmem:[%s403] sm:$0xff]
        %v405 = vld [vmem:[%s403 + $0x8] sm:$0xff]
        %v406 = vld [vmem:[%s403 + $0x10] sm:$0xff]
        %v407 = vld [vmem:[%s403 + $0x18] sm:$0xff]
        %v408 = vld [vmem:[%s403 + $0x20] sm:$0xff]
        %v409 = vld [vmem:[%s403 + $0x28] sm:$0xff]
        %v410 = vld [vmem:[%s403 + $0x30] sm:$0xff]
        %v411 = vld [vmem:[%s403 + $0x38] sm:$0xff]
        %v413 = vsel %vm384, %v401, 0
        %v416 = vsel %vm384, %v402, 0
        %418 = vmatprep.subr.mxu0 0.0
        %419 = vmatpush1.msra.mxu0 0.0
        %420 = vmatprep.subr.mxu0 0.0
        %421 = vmatpush1.msra.mxu0 0.0
        %422 = vmatprep.subr.mxu0 0.0
        %423 = vmatpush1.msra.mxu0 0.0
        %424 = vmatprep.subr.mxu0 0.0
        %425 = vmatpush1.msra.mxu0 0.0
        %426 = vmatprep.subr.mxu0 0.0
        %427 = vmatpush1.msra.mxu0 0.0
        %428 = vmatprep.subr.mxu0 0.0
        %429 = vmatpush1.msra.mxu0 0.0
        %430 = vmatprep.subr.mxu0 0.0
        %431 = vmatpush1.msra.mxu0 0.0
        %432 = vmatprep.subr.mxu0 0.0
        %433 = vmatpush1.msra.mxu0 0.0
        %434 = vmatprep.subr.mxu0 0.0
        %435 = vmatpush1.msra.mxu0 %v411
        %436 = vmatprep.subr.mxu0 0.0
        %437 = vmatpush1.msra.mxu0 %v410
        %438 = vmatprep.subr.mxu0 0.0
        %439 = vmatpush1.msra.mxu0 %v409
        %440 = vmatprep.subr.mxu0 0.0
        %441 = vmatpush1.msra.mxu0 %v408
        %442 = vmatprep.subr.mxu0 0.0
        %443 = vmatpush1.msra.mxu0 %v407
        %444 = vmatprep.subr.mxu0 0.0
        %445 = vmatpush1.msra.mxu0 %v406
        %446 = vmatprep.subr.mxu0 0.0
        %447 = vmatpush1.msra.mxu0 %v405
        %448 = vmatprep.subr.mxu0 0.0
        %449 = vmatpush1.msra.mxu0 %v404
        %450 = vmatprep.subr.mxu0 0.0
        %451 = vmatpush2.msra.mxu0 0.0
        %452 = vmatprep.subr.mxu0 0.0
        %453 = vmatpush2.msra.mxu0 0.0
        %454 = vmatprep.subr.mxu0 0.0
        %455 = vmatpush2.msra.mxu0 0.0
        %456 = vmatprep.subr.mxu0 0.0
        %457 = vmatpush2.msra.mxu0 0.0
        %458 = vmatprep.subr.mxu0 0.0
        %459 = vmatpush2.msra.mxu0 0.0
        %460 = vmatprep.subr.mxu0 0.0
        %461 = vmatpush2.msra.mxu0 0.0
        %462 = vmatprep.subr.mxu0 0.0
        %463 = vmatpush2.msra.mxu0 0.0
        %464 = vmatprep.subr.mxu0 0.0
        %465 = vmatpush2.msra.mxu0 0.0
        %466 = vmatprep.subr.mxu0 0.0
        %467 = vmatpush2.msra.mxu0 0.0
        %468 = vmatprep.subr.mxu0 0.0
        %469 = vmatpush2.msra.mxu0 0.0
        %470 = vmatprep.subr.mxu0 0.0
        %471 = vmatpush2.msra.mxu0 0.0
        %472 = vmatprep.subr.mxu0 0.0
        %473 = vmatpush2.msra.mxu0 0.0
        %474 = vmatprep.subr.mxu0 0.0
        %475 = vmatpush2.msra.mxu0 0.0
        %476 = vmatprep.subr.mxu0 0.0
        %477 = vmatpush2.msra.mxu0 0.0
        %478 = vmatprep.subr.mxu0 0.0
        %479 = vmatpush2.msra.mxu0 0.0
        %480 = vmatprep.subr.mxu0 0.0
        %481 = vmatpush2.msra.mxu0 0.0
        %482 = vmatprep.mubr.f32.mxu0 0.0
        %483 = vmatmul.mubr.f32.gmra.mxu0 %v413
        %v484 = vpop.f32.mrf.mxu0
        %v485 = vadd.f32 0.0, %v484
        %v486 = vpop.f32.mrf.mxu0
        %487 = vmatprep.mubr.f32.mxu0 0.0
        %488 = vmatmul.mubr.f32.gmra.mxu0 %v416
        %v489 = vpop.f32.mrf.mxu0
        %v490 = vadd.f32 0.0, %v489
        %v491 = vpop.f32.mrf.mxu0
        %492 = vdwg.mxu0
        %v494 = vsel %vm384, %v391, 0
        %v497 = vsel %vm384, %v392, 0
        %499 = vmatprep.subr.mxu0 0.0
        %500 = vmatpush1.msra.mxu0 0.0
        %501 = vmatprep.subr.mxu0 0.0
        %502 = vmatpush1.msra.mxu0 0.0
        %503 = vmatprep.subr.mxu0 0.0
        %504 = vmatpush1.msra.mxu0 0.0
        %505 = vmatprep.subr.mxu0 0.0
        %506 = vmatpush1.msra.mxu0 0.0
        %507 = vmatprep.subr.mxu0 0.0
        %508 = vmatpush1.msra.mxu0 0.0
        %509 = vmatprep.subr.mxu0 0.0
        %510 = vmatpush1.msra.mxu0 0.0
        %511 = vmatprep.subr.mxu0 0.0
        %512 = vmatpush1.msra.mxu0 0.0
        %513 = vmatprep.subr.mxu0 0.0
        %514 = vmatpush1.msra.mxu0 0.0
        %515 = vmatprep.subr.mxu0 0.0
        %516 = vmatpush1.msra.mxu0 %v400
        %517 = vmatprep.subr.mxu0 0.0
        %518 = vmatpush1.msra.mxu0 %v399
        %519 = vmatprep.subr.mxu0 0.0
        %520 = vmatpush1.msra.mxu0 %v398
        %521 = vmatprep.subr.mxu0 0.0
        %522 = vmatpush1.msra.mxu0 %v397
        %523 = vmatprep.subr.mxu0 0.0
        %524 = vmatpush1.msra.mxu0 %v396
        %525 = vmatprep.subr.mxu0 0.0
        %526 = vmatpush1.msra.mxu0 %v395
        %527 = vmatprep.subr.mxu0 0.0
        %528 = vmatpush1.msra.mxu0 %v394
        %529 = vmatprep.subr.mxu0 0.0
        %530 = vmatpush1.msra.mxu0 %v393
        %531 = vmatprep.subr.mxu0 0.0
        %532 = vmatpush2.msra.mxu0 0.0
        %533 = vmatprep.subr.mxu0 0.0
        %534 = vmatpush2.msra.mxu0 0.0
        %535 = vmatprep.subr.mxu0 0.0
        %536 = vmatpush2.msra.mxu0 0.0
        %537 = vmatprep.subr.mxu0 0.0
        %538 = vmatpush2.msra.mxu0 0.0
        %539 = vmatprep.subr.mxu0 0.0
        %540 = vmatpush2.msra.mxu0 0.0
        %541 = vmatprep.subr.mxu0 0.0
        %542 = vmatpush2.msra.mxu0 0.0
        %543 = vmatprep.subr.mxu0 0.0
        %544 = vmatpush2.msra.mxu0 0.0
        %545 = vmatprep.subr.mxu0 0.0
        %546 = vmatpush2.msra.mxu0 0.0
        %547 = vmatprep.subr.mxu0 0.0
        %548 = vmatpush2.msra.mxu0 0.0
        %549 = vmatprep.subr.mxu0 0.0
        %550 = vmatpush2.msra.mxu0 0.0
        %551 = vmatprep.subr.mxu0 0.0
        %552 = vmatpush2.msra.mxu0 0.0
        %553 = vmatprep.subr.mxu0 0.0
        %554 = vmatpush2.msra.mxu0 0.0
        %555 = vmatprep.subr.mxu0 0.0
        %556 = vmatpush2.msra.mxu0 0.0
        %557 = vmatprep.subr.mxu0 0.0
        %558 = vmatpush2.msra.mxu0 0.0
        %559 = vmatprep.subr.mxu0 0.0
        %560 = vmatpush2.msra.mxu0 0.0
        %561 = vmatprep.subr.mxu0 0.0
        %562 = vmatpush2.msra.mxu0 0.0
        %563 = vmatprep.mubr.f32.mxu0 0.0
        %564 = vmatmul.mubr.f32.gmra.mxu0 %v494
        %v565 = vpop.f32.mrf.mxu0
        %v566 = vadd.f32 %v485, %v565
        %v567 = vpop.f32.mrf.mxu0
        %568 = vmatprep.mubr.f32.mxu0 0.0
        %569 = vmatmul.mubr.f32.gmra.mxu0 %v497
        %v570 = vpop.f32.mrf.mxu0
        %v571 = vadd.f32 %v490, %v570
        %v572 = vpop.f32.mrf.mxu0
        %573 = vdwg.mxu0
        %v574 = vld [vmem:[#allocation2 + $0x2] sm:$0xff]
        %v575 = vld [vmem:[#allocation2 + $0xa] sm:$0xff]
        %s576 = scalar_lea.vmem [#allocation8], 128
        %v577 = vld [vmem:[%s576] sm:$0xff]
        %v578 = vld [vmem:[%s576 + $0x8] sm:$0xff]
        %v579 = vld [vmem:[%s576 + $0x10] sm:$0xff]
        %v580 = vld [vmem:[%s576 + $0x18] sm:$0xff]
        %v581 = vld [vmem:[%s576 + $0x20] sm:$0xff]
        %v582 = vld [vmem:[%s576 + $0x28] sm:$0xff]
        %v583 = vld [vmem:[%s576 + $0x30] sm:$0xff]
        %v584 = vld [vmem:[%s576 + $0x38] sm:$0xff]
        %v586 = vsel %vm384, %v574, 0
        %v589 = vsel %vm384, %v575, 0
        %591 = vmatprep.subr.mxu0 0.0
        %592 = vmatpush1.msra.mxu0 0.0
        %593 = vmatprep.subr.mxu0 0.0
        %594 = vmatpush1.msra.mxu0 0.0
        %595 = vmatprep.subr.mxu0 0.0
        %596 = vmatpush1.msra.mxu0 0.0
        %597 = vmatprep.subr.mxu0 0.0
        %598 = vmatpush1.msra.mxu0 0.0
        %599 = vmatprep.subr.mxu0 0.0
        %600 = vmatpush1.msra.mxu0 0.0
        %601 = vmatprep.subr.mxu0 0.0
        %602 = vmatpush1.msra.mxu0 0.0
        %603 = vmatprep.subr.mxu0 0.0
        %604 = vmatpush1.msra.mxu0 0.0
        %605 = vmatprep.subr.mxu0 0.0
        %606 = vmatpush1.msra.mxu0 0.0
        %607 = vmatprep.subr.mxu0 0.0
        %608 = vmatpush1.msra.mxu0 %v584
        %609 = vmatprep.subr.mxu0 0.0
        %610 = vmatpush1.msra.mxu0 %v583
        %611 = vmatprep.subr.mxu0 0.0
        %612 = vmatpush1.msra.mxu0 %v582
        %613 = vmatprep.subr.mxu0 0.0
        %614 = vmatpush1.msra.mxu0 %v581
        %615 = vmatprep.subr.mxu0 0.0
        %616 = vmatpush1.msra.mxu0 %v580
        %617 = vmatprep.subr.mxu0 0.0
        %618 = vmatpush1.msra.mxu0 %v579
        %619 = vmatprep.subr.mxu0 0.0
        %620 = vmatpush1.msra.mxu0 %v578
        %621 = vmatprep.subr.mxu0 0.0
        %622 = vmatpush1.msra.mxu0 %v577
        %623 = vmatprep.subr.mxu0 0.0
        %624 = vmatpush2.msra.mxu0 0.0
        %625 = vmatprep.subr.mxu0 0.0
        %626 = vmatpush2.msra.mxu0 0.0
        %627 = vmatprep.subr.mxu0 0.0
        %628 = vmatpush2.msra.mxu0 0.0
        %629 = vmatprep.subr.mxu0 0.0
        %630 = vmatpush2.msra.mxu0 0.0
        %631 = vmatprep.subr.mxu0 0.0
        %632 = vmatpush2.msra.mxu0 0.0
        %633 = vmatprep.subr.mxu0 0.0
        %634 = vmatpush2.msra.mxu0 0.0
        %635 = vmatprep.subr.mxu0 0.0
        %636 = vmatpush2.msra.mxu0 0.0
        %637 = vmatprep.subr.mxu0 0.0
        %638 = vmatpush2.msra.mxu0 0.0
        %639 = vmatprep.subr.mxu0 0.0
        %640 = vmatpush2.msra.mxu0 0.0
        %641 = vmatprep.subr.mxu0 0.0
        %642 = vmatpush2.msra.mxu0 0.0
        %643 = vmatprep.subr.mxu0 0.0
        %644 = vmatpush2.msra.mxu0 0.0
        %645 = vmatprep.subr.mxu0 0.0
        %646 = vmatpush2.msra.mxu0 0.0
        %647 = vmatprep.subr.mxu0 0.0
        %648 = vmatpush2.msra.mxu0 0.0
        %649 = vmatprep.subr.mxu0 0.0
        %650 = vmatpush2.msra.mxu0 0.0
        %651 = vmatprep.subr.mxu0 0.0
        %652 = vmatpush2.msra.mxu0 0.0
        %653 = vmatprep.subr.mxu0 0.0
        %654 = vmatpush2.msra.mxu0 0.0
        %655 = vmatprep.mubr.f32.mxu0 0.0
        %656 = vmatmul.mubr.f32.gmra.mxu0 %v586
        %v657 = vpop.f32.mrf.mxu0
        %v658 = vadd.f32 0.0, %v657
        %v659 = vpop.f32.mrf.mxu0
        %660 = vmatprep.mubr.f32.mxu0 0.0
        %661 = vmatmul.mubr.f32.gmra.mxu0 %v589
        %v662 = vpop.f32.mrf.mxu0
        %v663 = vadd.f32 0.0, %v662
        %v664 = vpop.f32.mrf.mxu0
        %665 = vdwg.mxu0
        %v666 = vadd.f32 %v566, %v658
        %v667 = vadd.f32 %v571, %v663
        %v668 = vld [vmem:[%s2] sm:$0x1]
        %v670 = vlaneseq
        %v671 = vshrl.u32 %v670, 7
        %v672 = vsub.s32 0, %v671
        %v673 = vrot.slane %v668, %v672
        %v675 = vadd.f32 %v666, %v673
        %v676 = vadd.f32 %v667, %v673
        %v677 = vmax.f32 %v675, 0.0
        %v678 = vmax.f32 %v676, 0.0
        %679 = vst [vmem:[#allocation3] sm:$0xff] 0.0
        %680 = vst [vmem:[#allocation3 + $0x8] sm:$0xff] 0.0
        %681 = vst [vmem:[#allocation3 + $0x10] sm:$0x3] 0.0
        %682 = vst [vmem:[#allocation3 + $0x1] sm:$0xff] %v677
        %683 = vst [vmem:[#allocation3 + $0x9] sm:$0xff] %v678
        %v684 = vld [vmem:[#allocation3] sm:$0xff]
        %v685 = vld [vmem:[#allocation3 + $0x8] sm:$0xff]
        %v686 = vld [vmem:[#allocation10] sm:$0xff]
        %v687 = vld [vmem:[#allocation10 + $0x8] sm:$0xff]
        %v688 = vld [vmem:[#allocation10 + $0x10] sm:$0xff]
        %v689 = vld [vmem:[#allocation10 + $0x18] sm:$0xff]
        %v690 = vld [vmem:[#allocation10 + $0x20] sm:$0xff]
        %v691 = vld [vmem:[#allocation10 + $0x28] sm:$0xff]
        %v692 = vld [vmem:[#allocation10 + $0x30] sm:$0xff]
        %v693 = vld [vmem:[#allocation10 + $0x38] sm:$0xff]
        %v694 = vld [vmem:[#allocation10 + $0x40] sm:$0xff]
        %v695 = vld [vmem:[#allocation10 + $0x48] sm:$0xff]
        %v696 = vld [vmem:[#allocation10 + $0x50] sm:$0xff]
        %v697 = vld [vmem:[#allocation10 + $0x58] sm:$0xff]
        %v698 = vld [vmem:[#allocation10 + $0x60] sm:$0xff]
        %v699 = vld [vmem:[#allocation10 + $0x68] sm:$0xff]
        %v700 = vld [vmem:[#allocation10 + $0x70] sm:$0xff]
        %v701 = vld [vmem:[#allocation10 + $0x78] sm:$0xff]
        %v702 = vld [vmem:[#allocation3 + $0x1] sm:$0xff]
        %v703 = vld [vmem:[#allocation3 + $0x9] sm:$0xff]
        %s704 = scalar_lea.vmem [#allocation10], 128
        %v705 = vld [vmem:[%s704] sm:$0xff]
        %v706 = vld [vmem:[%s704 + $0x8] sm:$0xff]
        %v707 = vld [vmem:[%s704 + $0x10] sm:$0xff]
        %v708 = vld [vmem:[%s704 + $0x18] sm:$0xff]
        %v709 = vld [vmem:[%s704 + $0x20] sm:$0xff]
        %v710 = vld [vmem:[%s704 + $0x28] sm:$0xff]
        %v711 = vld [vmem:[%s704 + $0x30] sm:$0xff]
        %v712 = vld [vmem:[%s704 + $0x38] sm:$0xff]
        %v713 = vld [vmem:[%s704 + $0x40] sm:$0xff]
        %v714 = vld [vmem:[%s704 + $0x48] sm:$0xff]
        %v715 = vld [vmem:[%s704 + $0x50] sm:$0xff]
        %v716 = vld [vmem:[%s704 + $0x58] sm:$0xff]
        %v717 = vld [vmem:[%s704 + $0x60] sm:$0xff]
        %v718 = vld [vmem:[%s704 + $0x68] sm:$0xff]
        %v719 = vld [vmem:[%s704 + $0x70] sm:$0xff]
        %v720 = vld [vmem:[%s704 + $0x78] sm:$0xff]
        %721 = vmatprep.subr.mxu0 0.0
        %722 = vmatpush1.msra.mxu0 %v720
        %723 = vmatprep.subr.mxu0 0.0
        %724 = vmatpush1.msra.mxu0 %v719
        %725 = vmatprep.subr.mxu0 0.0
        %726 = vmatpush1.msra.mxu0 %v718
        %727 = vmatprep.subr.mxu0 0.0
        %728 = vmatpush1.msra.mxu0 %v717
        %729 = vmatprep.subr.mxu0 0.0
        %730 = vmatpush1.msra.mxu0 %v716
        %731 = vmatprep.subr.mxu0 0.0
        %732 = vmatpush1.msra.mxu0 %v715
        %733 = vmatprep.subr.mxu0 0.0
        %734 = vmatpush1.msra.mxu0 %v714
        %735 = vmatprep.subr.mxu0 0.0
        %736 = vmatpush1.msra.mxu0 %v713
        %737 = vmatprep.subr.mxu0 0.0
        %738 = vmatpush1.msra.mxu0 %v712
        %739 = vmatprep.subr.mxu0 0.0
        %740 = vmatpush1.msra.mxu0 %v711
        %741 = vmatprep.subr.mxu0 0.0
        %742 = vmatpush1.msra.mxu0 %v710
        %743 = vmatprep.subr.mxu0 0.0
        %744 = vmatpush1.msra.mxu0 %v709
        %745 = vmatprep.subr.mxu0 0.0
        %746 = vmatpush1.msra.mxu0 %v708
        %747 = vmatprep.subr.mxu0 0.0
        %748 = vmatpush1.msra.mxu0 %v707
        %749 = vmatprep.subr.mxu0 0.0
        %750 = vmatpush1.msra.mxu0 %v706
        %751 = vmatprep.subr.mxu0 0.0
        %752 = vmatpush1.msra.mxu0 %v705
        %753 = vmatprep.subr.mxu0 0.0
        %754 = vmatpush2.msra.mxu0 0.0
        %755 = vmatprep.subr.mxu0 0.0
        %756 = vmatpush2.msra.mxu0 0.0
        %757 = vmatprep.subr.mxu0 0.0
        %758 = vmatpush2.msra.mxu0 0.0
        %759 = vmatprep.subr.mxu0 0.0
        %760 = vmatpush2.msra.mxu0 0.0
        %761 = vmatprep.subr.mxu0 0.0
        %762 = vmatpush2.msra.mxu0 0.0
        %763 = vmatprep.subr.mxu0 0.0
        %764 = vmatpush2.msra.mxu0 0.0
        %765 = vmatprep.subr.mxu0 0.0
        %766 = vmatpush2.msra.mxu0 0.0
        %767 = vmatprep.subr.mxu0 0.0
        %768 = vmatpush2.msra.mxu0 0.0
        %769 = vmatprep.subr.mxu0 0.0
        %770 = vmatpush2.msra.mxu0 0.0
        %771 = vmatprep.subr.mxu0 0.0
        %772 = vmatpush2.msra.mxu0 0.0
        %773 = vmatprep.subr.mxu0 0.0
        %774 = vmatpush2.msra.mxu0 0.0
        %775 = vmatprep.subr.mxu0 0.0
        %776 = vmatpush2.msra.mxu0 0.0
        %777 = vmatprep.subr.mxu0 0.0
        %778 = vmatpush2.msra.mxu0 0.0
        %779 = vmatprep.subr.mxu0 0.0
        %780 = vmatpush2.msra.mxu0 0.0
        %781 = vmatprep.subr.mxu0 0.0
        %782 = vmatpush2.msra.mxu0 0.0
        %783 = vmatprep.subr.mxu0 0.0
        %784 = vmatpush2.msra.mxu0 0.0
        %785 = vmatprep.mubr.f32.mxu0 0.0
        %786 = vmatmul.mubr.f32.gmra.mxu0 %v702
        %v787 = vpop.f32.mrf.mxu0
        %v788 = vadd.f32 0.0, %v787
        %v789 = vpop.f32.mrf.mxu0
        %790 = vmatprep.mubr.f32.mxu0 0.0
        %791 = vmatmul.mubr.f32.gmra.mxu0 %v703
        %v792 = vpop.f32.mrf.mxu0
        %v793 = vadd.f32 0.0, %v792
        %v794 = vpop.f32.mrf.mxu0
        %795 = vdwg.mxu0
        %796 = vmatprep.subr.mxu0 0.0
        %797 = vmatpush1.msra.mxu0 %v701
        %798 = vmatprep.subr.mxu0 0.0
        %799 = vmatpush1.msra.mxu0 %v700
        %800 = vmatprep.subr.mxu0 0.0
        %801 = vmatpush1.msra.mxu0 %v699
        %802 = vmatprep.subr.mxu0 0.0
        %803 = vmatpush1.msra.mxu0 %v698
        %804 = vmatprep.subr.mxu0 0.0
        %805 = vmatpush1.msra.mxu0 %v697
        %806 = vmatprep.subr.mxu0 0.0
        %807 = vmatpush1.msra.mxu0 %v696
        %808 = vmatprep.subr.mxu0 0.0
        %809 = vmatpush1.msra.mxu0 %v695
        %810 = vmatprep.subr.mxu0 0.0
        %811 = vmatpush1.msra.mxu0 %v694
        %812 = vmatprep.subr.mxu0 0.0
        %813 = vmatpush1.msra.mxu0 %v693
        %814 = vmatprep.subr.mxu0 0.0
        %815 = vmatpush1.msra.mxu0 %v692
        %816 = vmatprep.subr.mxu0 0.0
        %817 = vmatpush1.msra.mxu0 %v691
        %818 = vmatprep.subr.mxu0 0.0
        %819 = vmatpush1.msra.mxu0 %v690
        %820 = vmatprep.subr.mxu0 0.0
        %821 = vmatpush1.msra.mxu0 %v689
        %822 = vmatprep.subr.mxu0 0.0
        %823 = vmatpush1.msra.mxu0 %v688
        %824 = vmatprep.subr.mxu0 0.0
        %825 = vmatpush1.msra.mxu0 %v687
        %826 = vmatprep.subr.mxu0 0.0
        %827 = vmatpush1.msra.mxu0 %v686
        %828 = vmatprep.subr.mxu0 0.0
        %829 = vmatpush2.msra.mxu0 0.0
        %830 = vmatprep.subr.mxu0 0.0
        %831 = vmatpush2.msra.mxu0 0.0
        %832 = vmatprep.subr.mxu0 0.0
        %833 = vmatpush2.msra.mxu0 0.0
        %834 = vmatprep.subr.mxu0 0.0
        %835 = vmatpush2.msra.mxu0 0.0
        %836 = vmatprep.subr.mxu0 0.0
        %837 = vmatpush2.msra.mxu0 0.0
        %838 = vmatprep.subr.mxu0 0.0
        %839 = vmatpush2.msra.mxu0 0.0
        %840 = vmatprep.subr.mxu0 0.0
        %841 = vmatpush2.msra.mxu0 0.0
        %842 = vmatprep.subr.mxu0 0.0
        %843 = vmatpush2.msra.mxu0 0.0
        %844 = vmatprep.subr.mxu0 0.0
        %845 = vmatpush2.msra.mxu0 0.0
        %846 = vmatprep.subr.mxu0 0.0
        %847 = vmatpush2.msra.mxu0 0.0
        %848 = vmatprep.subr.mxu0 0.0
        %849 = vmatpush2.msra.mxu0 0.0
        %850 = vmatprep.subr.mxu0 0.0
        %851 = vmatpush2.msra.mxu0 0.0
        %852 = vmatprep.subr.mxu0 0.0
        %853 = vmatpush2.msra.mxu0 0.0
        %854 = vmatprep.subr.mxu0 0.0
        %855 = vmatpush2.msra.mxu0 0.0
        %856 = vmatprep.subr.mxu0 0.0
        %857 = vmatpush2.msra.mxu0 0.0
        %858 = vmatprep.subr.mxu0 0.0
        %859 = vmatpush2.msra.mxu0 0.0
        %860 = vmatprep.mubr.f32.mxu0 0.0
        %861 = vmatmul.mubr.f32.gmra.mxu0 %v684
        %v862 = vpop.f32.mrf.mxu0
        %v863 = vadd.f32 %v788, %v862
        %v864 = vpop.f32.mrf.mxu0
        %865 = vmatprep.mubr.f32.mxu0 0.0
        %866 = vmatmul.mubr.f32.gmra.mxu0 %v685
        %v867 = vpop.f32.mrf.mxu0
        %v868 = vadd.f32 %v793, %v867
        %v869 = vpop.f32.mrf.mxu0
        %870 = vdwg.mxu0
        %v871 = vld [vmem:[#allocation3 + $0x2] sm:$0xff]
        %v872 = vld [vmem:[#allocation3 + $0xa] sm:$0xff]
        %s873 = scalar_lea.vmem [#allocation10], 256
        %v874 = vld [vmem:[%s873] sm:$0xff]
        %v875 = vld [vmem:[%s873 + $0x8] sm:$0xff]
        %v876 = vld [vmem:[%s873 + $0x10] sm:$0xff]
        %v877 = vld [vmem:[%s873 + $0x18] sm:$0xff]
        %v878 = vld [vmem:[%s873 + $0x20] sm:$0xff]
        %v879 = vld [vmem:[%s873 + $0x28] sm:$0xff]
        %v880 = vld [vmem:[%s873 + $0x30] sm:$0xff]
        %v881 = vld [vmem:[%s873 + $0x38] sm:$0xff]
        %v882 = vld [vmem:[%s873 + $0x40] sm:$0xff]
        %v883 = vld [vmem:[%s873 + $0x48] sm:$0xff]
        %v884 = vld [vmem:[%s873 + $0x50] sm:$0xff]
        %v885 = vld [vmem:[%s873 + $0x58] sm:$0xff]
        %v886 = vld [vmem:[%s873 + $0x60] sm:$0xff]
        %v887 = vld [vmem:[%s873 + $0x68] sm:$0xff]
        %v888 = vld [vmem:[%s873 + $0x70] sm:$0xff]
        %v889 = vld [vmem:[%s873 + $0x78] sm:$0xff]
        %890 = vmatprep.subr.mxu0 0.0
        %891 = vmatpush1.msra.mxu0 %v889
        %892 = vmatprep.subr.mxu0 0.0
        %893 = vmatpush1.msra.mxu0 %v888
        %894 = vmatprep.subr.mxu0 0.0
        %895 = vmatpush1.msra.mxu0 %v887
        %896 = vmatprep.subr.mxu0 0.0
        %897 = vmatpush1.msra.mxu0 %v886
        %898 = vmatprep.subr.mxu0 0.0
        %899 = vmatpush1.msra.mxu0 %v885
        %900 = vmatprep.subr.mxu0 0.0
        %901 = vmatpush1.msra.mxu0 %v884
        %902 = vmatprep.subr.mxu0 0.0
        %903 = vmatpush1.msra.mxu0 %v883
        %904 = vmatprep.subr.mxu0 0.0
        %905 = vmatpush1.msra.mxu0 %v882
        %906 = vmatprep.subr.mxu0 0.0
        %907 = vmatpush1.msra.mxu0 %v881
        %908 = vmatprep.subr.mxu0 0.0
        %909 = vmatpush1.msra.mxu0 %v880
        %910 = vmatprep.subr.mxu0 0.0
        %911 = vmatpush1.msra.mxu0 %v879
        %912 = vmatprep.subr.mxu0 0.0
        %913 = vmatpush1.msra.mxu0 %v878
        %914 = vmatprep.subr.mxu0 0.0
        %915 = vmatpush1.msra.mxu0 %v877
        %916 = vmatprep.subr.mxu0 0.0
        %917 = vmatpush1.msra.mxu0 %v876
        %918 = vmatprep.subr.mxu0 0.0
        %919 = vmatpush1.msra.mxu0 %v875
        %920 = vmatprep.subr.mxu0 0.0
        %921 = vmatpush1.msra.mxu0 %v874
        %922 = vmatprep.subr.mxu0 0.0
        %923 = vmatpush2.msra.mxu0 0.0
        %924 = vmatprep.subr.mxu0 0.0
        %925 = vmatpush2.msra.mxu0 0.0
        %926 = vmatprep.subr.mxu0 0.0
        %927 = vmatpush2.msra.mxu0 0.0
        %928 = vmatprep.subr.mxu0 0.0
        %929 = vmatpush2.msra.mxu0 0.0
        %930 = vmatprep.subr.mxu0 0.0
        %931 = vmatpush2.msra.mxu0 0.0
        %932 = vmatprep.subr.mxu0 0.0
        %933 = vmatpush2.msra.mxu0 0.0
        %934 = vmatprep.subr.mxu0 0.0
        %935 = vmatpush2.msra.mxu0 0.0
        %936 = vmatprep.subr.mxu0 0.0
        %937 = vmatpush2.msra.mxu0 0.0
        %938 = vmatprep.subr.mxu0 0.0
        %939 = vmatpush2.msra.mxu0 0.0
        %940 = vmatprep.subr.mxu0 0.0
        %941 = vmatpush2.msra.mxu0 0.0
        %942 = vmatprep.subr.mxu0 0.0
        %943 = vmatpush2.msra.mxu0 0.0
        %944 = vmatprep.subr.mxu0 0.0
        %945 = vmatpush2.msra.mxu0 0.0
        %946 = vmatprep.subr.mxu0 0.0
        %947 = vmatpush2.msra.mxu0 0.0
        %948 = vmatprep.subr.mxu0 0.0
        %949 = vmatpush2.msra.mxu0 0.0
        %950 = vmatprep.subr.mxu0 0.0
        %951 = vmatpush2.msra.mxu0 0.0
        %952 = vmatprep.subr.mxu0 0.0
        %953 = vmatpush2.msra.mxu0 0.0
        %954 = vmatprep.mubr.f32.mxu0 0.0
        %955 = vmatmul.mubr.f32.gmra.mxu0 %v871
        %v956 = vpop.f32.mrf.mxu0
        %v957 = vadd.f32 0.0, %v956
        %v958 = vpop.f32.mrf.mxu0
        %959 = vmatprep.mubr.f32.mxu0 0.0
        %960 = vmatmul.mubr.f32.gmra.mxu0 %v872
        %v961 = vpop.f32.mrf.mxu0
        %v962 = vadd.f32 0.0, %v961
        %v963 = vpop.f32.mrf.mxu0
        %964 = vdwg.mxu0
        %v965 = vadd.f32 %v863, %v957
        %v966 = vadd.f32 %v868, %v962
        %v967 = vld [vmem:[%s4] sm:$0x1]
        %v969 = vlaneseq
        %v970 = vshrl.u32 %v969, 7
        %v971 = vsub.s32 0, %v970
        %v972 = vrot.slane %v967, %v971
        %v974 = vadd.f32 %v965, %v972
        %v975 = vadd.f32 %v966, %v972
        %v976 = vmax.f32 %v974, 0.0
        %v977 = vmax.f32 %v975, 0.0
        %978 = vst [vmem:[#allocation4] sm:$0xff] 0.0
        %979 = vst [vmem:[#allocation4 + $0x8] sm:$0xff] 0.0
        %980 = vst [vmem:[#allocation4 + $0x10] sm:$0x3] 0.0
        %981 = vst [vmem:[#allocation4 + $0x1] sm:$0xff] %v976
        %982 = vst [vmem:[#allocation4 + $0x9] sm:$0xff] %v977
        %v983 = vld [vmem:[#allocation4] sm:$0xff]
        %v984 = vld [vmem:[#allocation4 + $0x8] sm:$0xff]
        %v985 = vld [vmem:[#allocation11] sm:$0xff]
        %v986 = vld [vmem:[#allocation11 + $0x8] sm:$0xff]
        %v987 = vld [vmem:[#allocation11 + $0x10] sm:$0xff]
        %v988 = vld [vmem:[#allocation11 + $0x18] sm:$0xff]
        %v989 = vld [vmem:[#allocation11 + $0x20] sm:$0xff]
        %v990 = vld [vmem:[#allocation11 + $0x28] sm:$0xff]
        %v991 = vld [vmem:[#allocation11 + $0x30] sm:$0xff]
        %v992 = vld [vmem:[#allocation11 + $0x38] sm:$0xff]
        %v993 = vld [vmem:[#allocation11 + $0x40] sm:$0xff]
        %v994 = vld [vmem:[#allocation11 + $0x48] sm:$0xff]
        %v995 = vld [vmem:[#allocation11 + $0x50] sm:$0xff]
        %v996 = vld [vmem:[#allocation11 + $0x58] sm:$0xff]
        %v997 = vld [vmem:[#allocation11 + $0x60] sm:$0xff]
        %v998 = vld [vmem:[#allocation11 + $0x68] sm:$0xff]
        %v999 = vld [vmem:[#allocation11 + $0x70] sm:$0xff]
        %v1000 = vld [vmem:[#allocation11 + $0x78] sm:$0xff]
        %v1001 = vld [vmem:[#allocation4 + $0x1] sm:$0xff]
        %v1002 = vld [vmem:[#allocation4 + $0x9] sm:$0xff]
        %s1003 = scalar_lea.vmem [#allocation11], 128
        %v1004 = vld [vmem:[%s1003] sm:$0xff]
        %v1005 = vld [vmem:[%s1003 + $0x8] sm:$0xff]
        %v1006 = vld [vmem:[%s1003 + $0x10] sm:$0xff]
        %v1007 = vld [vmem:[%s1003 + $0x18] sm:$0xff]
        %v1008 = vld [vmem:[%s1003 + $0x20] sm:$0xff]
        %v1009 = vld [vmem:[%s1003 + $0x28] sm:$0xff]
        %v1010 = vld [vmem:[%s1003 + $0x30] sm:$0xff]
        %v1011 = vld [vmem:[%s1003 + $0x38] sm:$0xff]
        %v1012 = vld [vmem:[%s1003 + $0x40] sm:$0xff]
        %v1013 = vld [vmem:[%s1003 + $0x48] sm:$0xff]
        %v1014 = vld [vmem:[%s1003 + $0x50] sm:$0xff]
        %v1015 = vld [vmem:[%s1003 + $0x58] sm:$0xff]
        %v1016 = vld [vmem:[%s1003 + $0x60] sm:$0xff]
        %v1017 = vld [vmem:[%s1003 + $0x68] sm:$0xff]
        %v1018 = vld [vmem:[%s1003 + $0x70] sm:$0xff]
        %v1019 = vld [vmem:[%s1003 + $0x78] sm:$0xff]
        %1020 = vmatprep.subr.mxu0 0.0
        %1021 = vmatpush1.msra.mxu0 %v1019
        %1022 = vmatprep.subr.mxu0 0.0
        %1023 = vmatpush1.msra.mxu0 %v1018
        %1024 = vmatprep.subr.mxu0 0.0
        %1025 = vmatpush1.msra.mxu0 %v1017
        %1026 = vmatprep.subr.mxu0 0.0
        %1027 = vmatpush1.msra.mxu0 %v1016
        %1028 = vmatprep.subr.mxu0 0.0
        %1029 = vmatpush1.msra.mxu0 %v1015
        %1030 = vmatprep.subr.mxu0 0.0
        %1031 = vmatpush1.msra.mxu0 %v1014
        %1032 = vmatprep.subr.mxu0 0.0
        %1033 = vmatpush1.msra.mxu0 %v1013
        %1034 = vmatprep.subr.mxu0 0.0
        %1035 = vmatpush1.msra.mxu0 %v1012
        %1036 = vmatprep.subr.mxu0 0.0
        %1037 = vmatpush1.msra.mxu0 %v1011
        %1038 = vmatprep.subr.mxu0 0.0
        %1039 = vmatpush1.msra.mxu0 %v1010
        %1040 = vmatprep.subr.mxu0 0.0
        %1041 = vmatpush1.msra.mxu0 %v1009
        %1042 = vmatprep.subr.mxu0 0.0
        %1043 = vmatpush1.msra.mxu0 %v1008
        %1044 = vmatprep.subr.mxu0 0.0
        %1045 = vmatpush1.msra.mxu0 %v1007
        %1046 = vmatprep.subr.mxu0 0.0
        %1047 = vmatpush1.msra.mxu0 %v1006
        %1048 = vmatprep.subr.mxu0 0.0
        %1049 = vmatpush1.msra.mxu0 %v1005
        %1050 = vmatprep.subr.mxu0 0.0
        %1051 = vmatpush1.msra.mxu0 %v1004
        %1052 = vmatprep.subr.mxu0 0.0
        %1053 = vmatpush2.msra.mxu0 0.0
        %1054 = vmatprep.subr.mxu0 0.0
        %1055 = vmatpush2.msra.mxu0 0.0
        %1056 = vmatprep.subr.mxu0 0.0
        %1057 = vmatpush2.msra.mxu0 0.0
        %1058 = vmatprep.subr.mxu0 0.0
        %1059 = vmatpush2.msra.mxu0 0.0
        %1060 = vmatprep.subr.mxu0 0.0
        %1061 = vmatpush2.msra.mxu0 0.0
        %1062 = vmatprep.subr.mxu0 0.0
        %1063 = vmatpush2.msra.mxu0 0.0
        %1064 = vmatprep.subr.mxu0 0.0
        %1065 = vmatpush2.msra.mxu0 0.0
        %1066 = vmatprep.subr.mxu0 0.0
        %1067 = vmatpush2.msra.mxu0 0.0
        %1068 = vmatprep.subr.mxu0 0.0
        %1069 = vmatpush2.msra.mxu0 0.0
        %1070 = vmatprep.subr.mxu0 0.0
        %1071 = vmatpush2.msra.mxu0 0.0
        %1072 = vmatprep.subr.mxu0 0.0
        %1073 = vmatpush2.msra.mxu0 0.0
        %1074 = vmatprep.subr.mxu0 0.0
        %1075 = vmatpush2.msra.mxu0 0.0
        %1076 = vmatprep.subr.mxu0 0.0
        %1077 = vmatpush2.msra.mxu0 0.0
        %1078 = vmatprep.subr.mxu0 0.0
        %1079 = vmatpush2.msra.mxu0 0.0
        %1080 = vmatprep.subr.mxu0 0.0
        %1081 = vmatpush2.msra.mxu0 0.0
        %1082 = vmatprep.subr.mxu0 0.0
        %1083 = vmatpush2.msra.mxu0 0.0
        %1084 = vmatprep.mubr.f32.mxu0 0.0
        %1085 = vmatmul.mubr.f32.gmra.mxu0 %v1001
        %v1086 = vpop.f32.mrf.mxu0
        %v1087 = vadd.f32 0.0, %v1086
        %v1088 = vpop.f32.mrf.mxu0
        %1089 = vmatprep.mubr.f32.mxu0 0.0
        %1090 = vmatmul.mubr.f32.gmra.mxu0 %v1002
        %v1091 = vpop.f32.mrf.mxu0
        %v1092 = vadd.f32 0.0, %v1091
        %v1093 = vpop.f32.mrf.mxu0
        %1094 = vdwg.mxu0
        %1095 = vmatprep.subr.mxu0 0.0
        %1096 = vmatpush1.msra.mxu0 %v1000
        %1097 = vmatprep.subr.mxu0 0.0
        %1098 = vmatpush1.msra.mxu0 %v999
        %1099 = vmatprep.subr.mxu0 0.0
        %1100 = vmatpush1.msra.mxu0 %v998
        %1101 = vmatprep.subr.mxu0 0.0
        %1102 = vmatpush1.msra.mxu0 %v997
        %1103 = vmatprep.subr.mxu0 0.0
        %1104 = vmatpush1.msra.mxu0 %v996
        %1105 = vmatprep.subr.mxu0 0.0
        %1106 = vmatpush1.msra.mxu0 %v995
        %1107 = vmatprep.subr.mxu0 0.0
        %1108 = vmatpush1.msra.mxu0 %v994
        %1109 = vmatprep.subr.mxu0 0.0
        %1110 = vmatpush1.msra.mxu0 %v993
        %1111 = vmatprep.subr.mxu0 0.0
        %1112 = vmatpush1.msra.mxu0 %v992
        %1113 = vmatprep.subr.mxu0 0.0
        %1114 = vmatpush1.msra.mxu0 %v991
        %1115 = vmatprep.subr.mxu0 0.0
        %1116 = vmatpush1.msra.mxu0 %v990
        %1117 = vmatprep.subr.mxu0 0.0
        %1118 = vmatpush1.msra.mxu0 %v989
        %1119 = vmatprep.subr.mxu0 0.0
        %1120 = vmatpush1.msra.mxu0 %v988
        %1121 = vmatprep.subr.mxu0 0.0
        %1122 = vmatpush1.msra.mxu0 %v987
        %1123 = vmatprep.subr.mxu0 0.0
        %1124 = vmatpush1.msra.mxu0 %v986
        %1125 = vmatprep.subr.mxu0 0.0
        %1126 = vmatpush1.msra.mxu0 %v985
        %1127 = vmatprep.subr.mxu0 0.0
        %1128 = vmatpush2.msra.mxu0 0.0
        %1129 = vmatprep.subr.mxu0 0.0
        %1130 = vmatpush2.msra.mxu0 0.0
        %1131 = vmatprep.subr.mxu0 0.0
        %1132 = vmatpush2.msra.mxu0 0.0
        %1133 = vmatprep.subr.mxu0 0.0
        %1134 = vmatpush2.msra.mxu0 0.0
        %1135 = vmatprep.subr.mxu0 0.0
        %1136 = vmatpush2.msra.mxu0 0.0
        %1137 = vmatprep.subr.mxu0 0.0
        %1138 = vmatpush2.msra.mxu0 0.0
        %1139 = vmatprep.subr.mxu0 0.0
        %1140 = vmatpush2.msra.mxu0 0.0
        %1141 = vmatprep.subr.mxu0 0.0
        %1142 = vmatpush2.msra.mxu0 0.0
        %1143 = vmatprep.subr.mxu0 0.0
        %1144 = vmatpush2.msra.mxu0 0.0
        %1145 = vmatprep.subr.mxu0 0.0
        %1146 = vmatpush2.msra.mxu0 0.0
        %1147 = vmatprep.subr.mxu0 0.0
        %1148 = vmatpush2.msra.mxu0 0.0
        %1149 = vmatprep.subr.mxu0 0.0
        %1150 = vmatpush2.msra.mxu0 0.0
        %1151 = vmatprep.subr.mxu0 0.0
        %1152 = vmatpush2.msra.mxu0 0.0
        %1153 = vmatprep.subr.mxu0 0.0
        %1154 = vmatpush2.msra.mxu0 0.0
        %1155 = vmatprep.subr.mxu0 0.0
        %1156 = vmatpush2.msra.mxu0 0.0
        %1157 = vmatprep.subr.mxu0 0.0
        %1158 = vmatpush2.msra.mxu0 0.0
        %1159 = vmatprep.mubr.f32.mxu0 0.0
        %1160 = vmatmul.mubr.f32.gmra.mxu0 %v983
        %v1161 = vpop.f32.mrf.mxu0
        %v1162 = vadd.f32 %v1087, %v1161
        %v1163 = vpop.f32.mrf.mxu0
        %1164 = vmatprep.mubr.f32.mxu0 0.0
        %1165 = vmatmul.mubr.f32.gmra.mxu0 %v984
        %v1166 = vpop.f32.mrf.mxu0
        %v1167 = vadd.f32 %v1092, %v1166
        %v1168 = vpop.f32.mrf.mxu0
        %1169 = vdwg.mxu0
        %v1170 = vld [vmem:[#allocation4 + $0x2] sm:$0xff]
        %v1171 = vld [vmem:[#allocation4 + $0xa] sm:$0xff]
        %s1172 = scalar_lea.vmem [#allocation11], 256
        %v1173 = vld [vmem:[%s1172] sm:$0xff]
        %v1174 = vld [vmem:[%s1172 + $0x8] sm:$0xff]
        %v1175 = vld [vmem:[%s1172 + $0x10] sm:$0xff]
        %v1176 = vld [vmem:[%s1172 + $0x18] sm:$0xff]
        %v1177 = vld [vmem:[%s1172 + $0x20] sm:$0xff]
        %v1178 = vld [vmem:[%s1172 + $0x28] sm:$0xff]
        %v1179 = vld [vmem:[%s1172 + $0x30] sm:$0xff]
        %v1180 = vld [vmem:[%s1172 + $0x38] sm:$0xff]
        %v1181 = vld [vmem:[%s1172 + $0x40] sm:$0xff]
        %v1182 = vld [vmem:[%s1172 + $0x48] sm:$0xff]
        %v1183 = vld [vmem:[%s1172 + $0x50] sm:$0xff]
        %v1184 = vld [vmem:[%s1172 + $0x58] sm:$0xff]
        %v1185 = vld [vmem:[%s1172 + $0x60] sm:$0xff]
        %v1186 = vld [vmem:[%s1172 + $0x68] sm:$0xff]
        %v1187 = vld [vmem:[%s1172 + $0x70] sm:$0xff]
        %v1188 = vld [vmem:[%s1172 + $0x78] sm:$0xff]
        %1189 = vmatprep.subr.mxu0 0.0
        %1190 = vmatpush1.msra.mxu0 %v1188
        %1191 = vmatprep.subr.mxu0 0.0
        %1192 = vmatpush1.msra.mxu0 %v1187
        %1193 = vmatprep.subr.mxu0 0.0
        %1194 = vmatpush1.msra.mxu0 %v1186
        %1195 = vmatprep.subr.mxu0 0.0
        %1196 = vmatpush1.msra.mxu0 %v1185
        %1197 = vmatprep.subr.mxu0 0.0
        %1198 = vmatpush1.msra.mxu0 %v1184
        %1199 = vmatprep.subr.mxu0 0.0
        %1200 = vmatpush1.msra.mxu0 %v1183
        %1201 = vmatprep.subr.mxu0 0.0
        %1202 = vmatpush1.msra.mxu0 %v1182
        %1203 = vmatprep.subr.mxu0 0.0
        %1204 = vmatpush1.msra.mxu0 %v1181
        %1205 = vmatprep.subr.mxu0 0.0
        %1206 = vmatpush1.msra.mxu0 %v1180
        %1207 = vmatprep.subr.mxu0 0.0
        %1208 = vmatpush1.msra.mxu0 %v1179
        %1209 = vmatprep.subr.mxu0 0.0
        %1210 = vmatpush1.msra.mxu0 %v1178
        %1211 = vmatprep.subr.mxu0 0.0
        %1212 = vmatpush1.msra.mxu0 %v1177
        %1213 = vmatprep.subr.mxu0 0.0
        %1214 = vmatpush1.msra.mxu0 %v1176
        %1215 = vmatprep.subr.mxu0 0.0
        %1216 = vmatpush1.msra.mxu0 %v1175
        %1217 = vmatprep.subr.mxu0 0.0
        %1218 = vmatpush1.msra.mxu0 %v1174
        %1219 = vmatprep.subr.mxu0 0.0
        %1220 = vmatpush1.msra.mxu0 %v1173
        %1221 = vmatprep.subr.mxu0 0.0
        %1222 = vmatpush2.msra.mxu0 0.0
        %1223 = vmatprep.subr.mxu0 0.0
        %1224 = vmatpush2.msra.mxu0 0.0
        %1225 = vmatprep.subr.mxu0 0.0
        %1226 = vmatpush2.msra.mxu0 0.0
        %1227 = vmatprep.subr.mxu0 0.0
        %1228 = vmatpush2.msra.mxu0 0.0
        %1229 = vmatprep.subr.mxu0 0.0
        %1230 = vmatpush2.msra.mxu0 0.0
        %1231 = vmatprep.subr.mxu0 0.0
        %1232 = vmatpush2.msra.mxu0 0.0
        %1233 = vmatprep.subr.mxu0 0.0
        %1234 = vmatpush2.msra.mxu0 0.0
        %1235 = vmatprep.subr.mxu0 0.0
        %1236 = vmatpush2.msra.mxu0 0.0
        %1237 = vmatprep.subr.mxu0 0.0
        %1238 = vmatpush2.msra.mxu0 0.0
        %1239 = vmatprep.subr.mxu0 0.0
        %1240 = vmatpush2.msra.mxu0 0.0
        %1241 = vmatprep.subr.mxu0 0.0
        %1242 = vmatpush2.msra.mxu0 0.0
        %1243 = vmatprep.subr.mxu0 0.0
        %1244 = vmatpush2.msra.mxu0 0.0
        %1245 = vmatprep.subr.mxu0 0.0
        %1246 = vmatpush2.msra.mxu0 0.0
        %1247 = vmatprep.subr.mxu0 0.0
        %1248 = vmatpush2.msra.mxu0 0.0
        %1249 = vmatprep.subr.mxu0 0.0
        %1250 = vmatpush2.msra.mxu0 0.0
        %1251 = vmatprep.subr.mxu0 0.0
        %1252 = vmatpush2.msra.mxu0 0.0
        %1253 = vmatprep.mubr.f32.mxu0 0.0
        %1254 = vmatmul.mubr.f32.gmra.mxu0 %v1170
        %v1255 = vpop.f32.mrf.mxu0
        %v1256 = vadd.f32 0.0, %v1255
        %v1257 = vpop.f32.mrf.mxu0
        %1258 = vmatprep.mubr.f32.mxu0 0.0
        %1259 = vmatmul.mubr.f32.gmra.mxu0 %v1171
        %v1260 = vpop.f32.mrf.mxu0
        %v1261 = vadd.f32 0.0, %v1260
        %v1262 = vpop.f32.mrf.mxu0
        %1263 = vdwg.mxu0
        %v1264 = vadd.f32 %v1162, %v1256
        %v1265 = vadd.f32 %v1167, %v1261
        %v1266 = vld [vmem:[%s6] sm:$0x1]
        %v1268 = vlaneseq
        %v1269 = vshrl.u32 %v1268, 7
        %v1270 = vsub.s32 0, %v1269
        %v1271 = vrot.slane %v1266, %v1270
        %v1273 = vadd.f32 %v1264, %v1271
        %v1274 = vadd.f32 %v1265, %v1271
        %v1275 = vld [vmem:[#allocation13] sm:$0xff]
        %v1276 = vld [vmem:[#allocation13 + $0x8] sm:$0xff]
        %v1277 = vld [vmem:[#allocation13 + $0x10] sm:$0xff]
        %v1278 = vld [vmem:[#allocation13 + $0x18] sm:$0xff]
        %v1279 = vld [vmem:[#allocation13 + $0x20] sm:$0xff]
        %v1280 = vld [vmem:[#allocation13 + $0x28] sm:$0xff]
        %v1281 = vld [vmem:[#allocation13 + $0x30] sm:$0xff]
        %v1282 = vld [vmem:[#allocation13 + $0x38] sm:$0xff]
        %v1284 = vsel %vm384, %v382, 0
        %v1287 = vsel %vm384, %v383, 0
        %1289 = vmatprep.subr.mxu0 0.0
        %1290 = vmatpush1.msra.mxu0 0.0
        %1291 = vmatprep.subr.mxu0 0.0
        %1292 = vmatpush1.msra.mxu0 0.0
        %1293 = vmatprep.subr.mxu0 0.0
        %1294 = vmatpush1.msra.mxu0 0.0
        %1295 = vmatprep.subr.mxu0 0.0
        %1296 = vmatpush1.msra.mxu0 0.0
        %1297 = vmatprep.subr.mxu0 0.0
        %1298 = vmatpush1.msra.mxu0 0.0
        %1299 = vmatprep.subr.mxu0 0.0
        %1300 = vmatpush1.msra.mxu0 0.0
        %1301 = vmatprep.subr.mxu0 0.0
        %1302 = vmatpush1.msra.mxu0 0.0
        %1303 = vmatprep.subr.mxu0 0.0
        %1304 = vmatpush1.msra.mxu0 0.0
        %1305 = vmatprep.subr.mxu0 0.0
        %1306 = vmatpush1.msra.mxu0 %v1282
        %1307 = vmatprep.subr.mxu0 0.0
        %1308 = vmatpush1.msra.mxu0 %v1281
        %1309 = vmatprep.subr.mxu0 0.0
        %1310 = vmatpush1.msra.mxu0 %v1280
        %1311 = vmatprep.subr.mxu0 0.0
        %1312 = vmatpush1.msra.mxu0 %v1279
        %1313 = vmatprep.subr.mxu0 0.0
        %1314 = vmatpush1.msra.mxu0 %v1278
        %1315 = vmatprep.subr.mxu0 0.0
        %1316 = vmatpush1.msra.mxu0 %v1277
        %1317 = vmatprep.subr.mxu0 0.0
        %1318 = vmatpush1.msra.mxu0 %v1276
        %1319 = vmatprep.subr.mxu0 0.0
        %1320 = vmatpush1.msra.mxu0 %v1275
        %1321 = vmatprep.subr.mxu0 0.0
        %1322 = vmatpush2.msra.mxu0 0.0
        %1323 = vmatprep.subr.mxu0 0.0
        %1324 = vmatpush2.msra.mxu0 0.0
        %1325 = vmatprep.subr.mxu0 0.0
        %1326 = vmatpush2.msra.mxu0 0.0
        %1327 = vmatprep.subr.mxu0 0.0
        %1328 = vmatpush2.msra.mxu0 0.0
        %1329 = vmatprep.subr.mxu0 0.0
        %1330 = vmatpush2.msra.mxu0 0.0
        %1331 = vmatprep.subr.mxu0 0.0
        %1332 = vmatpush2.msra.mxu0 0.0
        %1333 = vmatprep.subr.mxu0 0.0
        %1334 = vmatpush2.msra.mxu0 0.0
        %1335 = vmatprep.subr.mxu0 0.0
        %1336 = vmatpush2.msra.mxu0 0.0
        %1337 = vmatprep.subr.mxu0 0.0
        %1338 = vmatpush2.msra.mxu0 0.0
        %1339 = vmatprep.subr.mxu0 0.0
        %1340 = vmatpush2.msra.mxu0 0.0
        %1341 = vmatprep.subr.mxu0 0.0
        %1342 = vmatpush2.msra.mxu0 0.0
        %1343 = vmatprep.subr.mxu0 0.0
        %1344 = vmatpush2.msra.mxu0 0.0
        %1345 = vmatprep.subr.mxu0 0.0
        %1346 = vmatpush2.msra.mxu0 0.0
        %1347 = vmatprep.subr.mxu0 0.0
        %1348 = vmatpush2.msra.mxu0 0.0
        %1349 = vmatprep.subr.mxu0 0.0
        %1350 = vmatpush2.msra.mxu0 0.0
        %1351 = vmatprep.subr.mxu0 0.0
        %1352 = vmatpush2.msra.mxu0 0.0
        %1353 = vmatprep.mubr.f32.mxu0 0.0
        %1354 = vmatmul.mubr.f32.gmra.mxu0 %v1284
        %v1355 = vpop.f32.mrf.mxu0
        %v1356 = vadd.f32 0.0, %v1355
        %v1357 = vpop.f32.mrf.mxu0
        %1358 = vmatprep.mubr.f32.mxu0 0.0
        %1359 = vmatmul.mubr.f32.gmra.mxu0 %v1287
        %v1360 = vpop.f32.mrf.mxu0
        %v1361 = vadd.f32 0.0, %v1360
        %v1362 = vpop.f32.mrf.mxu0
        %1363 = vdwg.mxu0
        %v1364 = vadd.f32 %v1273, %v1356
        %v1365 = vadd.f32 %v1274, %v1361
        %v1366 = vmax.f32 %v1364, 0.0
        %v1367 = vmax.f32 %v1365, 0.0
        %1368 = vst [vmem:[%s381] sm:$0xff] %v1366
        %1369 = vst [vmem:[%s381 + $0x8] sm:$0xff] %v1367
        %s1370 = sand.u32 %s208, 1
        %s1371 = scalar_lea.sflag [#allocation7], %s1370
        %s1372 = sand.u32 %s208, 1
        %s1373 = smul.addr %s1372, 16
        %s1374 = scalar_lea.vmem [#allocation14], %s1373
        // Predicated region
        $region73: #{tpu_custom_call.1} parent=51 // pred_check
          %p1375 = pneg %p218
        $region74: #{tpu_custom_call.1} parent=51 // pred_check_branch
          %1377 = sbr.rel (%p1375) target = $region76
        $region75: #{tpu_custom_call.1} parent=51 // pred_region
          %s1379 = ssub.s32 256, 256
          %1380 = vsyncadd %s1371, %s1379
          %s1381 = smul.addr %s27, 2
          %s1382 = smul.addr %s1381, 128
          %s1383 = scalar_lea.hbm %s8, %s1382
          %s1384 = sshll.u32 %s1374, 4
          %s1385 = int_to_ptr.vmem [resolvable:$true] %s1384
          %1390 = dma.vmem_to_hbm [thread:$0]  %s1385, 256, %s1383, %s1371, 128, 128, 8
        $region76: #{tpu_custom_call.1} parent=51 // pred_fallthru
          _
      $region52: #{tpu_custom_call.1} parent=5 // pred_fallthru
        _
      %p1391 = scmp.le.s32.totalorder 2, %s22
      // Predicated region
      $region77: #{tpu_custom_call.1} parent=5 // pred_check
        %p1392 = pneg %p1391
      $region78: #{tpu_custom_call.1} parent=5 // pred_check_branch
        %1394 = sbr.rel (%p1392) target = $region80
      $region79: #{tpu_custom_call.1} parent=5 // pred_region
        %s1395 = ssub.s32 %s22, 2
        // Predicated region
        $region81: #{tpu_custom_call.1} parent=79 // pred_check
          %p1396 = pneg %p224
        $region82: #{tpu_custom_call.1} parent=79 // pred_check_branch
          %1398 = sbr.rel (%p1396) target = $region84
        $region83: #{tpu_custom_call.1} parent=79 // pred_region
          %s1399 = sand.u32 %s209, 1
          %s1400 = scalar_lea.sflag [#allocation7], %s1399
          %s1401 = sand.u32 %s209, 1
          %s1402 = smul.addr %s1401, 16
          %s1403 = scalar_lea.vmem [#allocation14], %s1402
          %1404 = dma.done %s1400, 256
        $region84: #{tpu_custom_call.1} parent=79 // pred_fallthru
          _
      $region80: #{tpu_custom_call.1} parent=5 // pred_fallthru
        _
    $region6: #{tpu_custom_call.1} parent=1 // loop_footer
      %s26 = sadd.s32 1, %s22
    $region7: #{tpu_custom_call.1} parent=1 // loop_footer_branch
      %21 = sbr.rel target = $region3
    $region8: #{tpu_custom_call.1} parent=1 // loop_exit
      _
    %1405 = vsyncpa [#allocation6], 1
    %s1406 = scalar_lea.sflag [#allocation6], 1
    %1407 = vsyncpa %s1406, 1
    %1408 = vsyncpa [#allocation9], 1
    %1409 = vsyncpa [#allocation12], 1
    %1410 = vsyncpa [#allocation7], 1
    %s1411 = scalar_lea.sflag [#allocation7], 1
    %1412 = vsyncpa %s1411, 1

</llo_original>
